<compile_context>
chip_gen: v7x
topology: tpu7x:2x2x1
jax: 0.10.0
libtpu: 0.0.40
codegen_flags: <defaults>
</compile_context>

<pallas_src>
import functools

import jax
import jax.numpy as jnp
from jax.experimental import pallas as pl
from jax.experimental.pallas import tpu as pltpu


_MASK_VALUE = -1e30     # folded into ebias where there is no edge
_VALID_THRESH = -1e29   # running max above this => row has at least one edge


def _als_conv_kernel(xq_ref, xkv_ref, ebias_ref, a_ref, wv_ref, wskip_ref,
                     o_ref, m_sc, l_sc, acc_sc, *, alpha, residual):
    ki = pl.program_id(1)

    @pl.when(ki == 0)
    def _():
        m_sc[...] = jnp.full(m_sc.shape, -jnp.inf, m_sc.dtype)
        l_sc[...] = jnp.zeros(l_sc.shape, l_sc.dtype)
        acc_sc[...] = jnp.zeros(acc_sc.shape, acc_sc.dtype)

    xq = xq_ref[...].astype(jnp.float32)            # [tq, Din]
    xkv = xkv_ref[...].astype(jnp.float32)          # [tk, Din]
    heads = a_ref.shape[0]
    tq, din = xq.shape
    tk = xkv.shape[0]

    # logits[h] = xq @ (scale * Wq_h Wk_h^T) @ xkv^T + ebias[h]   (mask folded in)
    xq_b = jnp.broadcast_to(xq[None], (heads, tq, din))
    xkv_b = jnp.broadcast_to(xkv[None], (heads, tk, din))
    kproj = jnp.einsum("hdf,hkf->hdk", a_ref[...], xkv_b,
                       preferred_element_type=jnp.float32)        # [H, Din, tk]
    logits = jnp.einsum("hqd,hdk->hqk", xq_b, kproj,
                        preferred_element_type=jnp.float32)       # [H, tq, tk]
    logits = logits + ebias_ref[...].astype(jnp.float32)

    # online softmax (flash-style) over the kv grid axis
    m_prev = m_sc[...]
    m_new = jnp.maximum(m_prev, jnp.max(logits, axis=-1, keepdims=True))
    corr = jnp.exp(m_prev - m_new)
    p = jnp.exp(logits - m_new)                                   # masked -> 0
    l_sc[...] = corr * l_sc[...] + jnp.sum(p, axis=-1, keepdims=True)

    # per-head values, pre-placed into each head's output lane band
    v_placed = jnp.einsum("hkd,hdf->hkf", xkv_b, wv_ref[...],
                          preferred_element_type=jnp.float32)     # [H, tk, Dout]
    acc_sc[...] = corr * acc_sc[...] + jnp.einsum(
        "hqk,hkf->hqf", p, v_placed, preferred_element_type=jnp.float32)
    m_sc[...] = m_new

    @pl.when(ki == pl.num_programs(1) - 1)
    def _():
        inv_l = pl.reciprocal(l_sc[...], approx=True)             # EUP slot
        valid = m_sc[...] > jnp.float32(_VALID_THRESH)            # isolated row -> 0
        agg = jnp.sum(jnp.where(valid, acc_sc[...] * inv_l, 0.0), axis=0)  # [tq, Dout]

        skip = jnp.dot(xq, wskip_ref[...], preferred_element_type=jnp.float32)
        y = alpha * skip + (1.0 - alpha) * agg
        y = jnp.maximum(y, 0.0)       # act = ReLU; Dropout = identity in eval mode
        if residual:
            y = xq + y                # batch.x = x_in + batch.x
        o_ref[...] = y.astype(o_ref.dtype)


def _round_up(v, m):
    return (v + m - 1) // m * m


def _vmem_limit_bytes(tq, tk, din, dout, heads):
    f32, bf16 = 4, 2
    per_step = (tq * din * f32 + tk * din * f32        # x blocks
                + heads * tq * tk * bf16               # bias block
                + heads * din * din * f32              # A
                + heads * din * dout * f32             # placed Wv
                + din * dout * f32                     # Wskip
                + tq * dout * f32)                     # output block
    scratch = heads * tq * (dout + 2 * 128) * f32      # acc + (m, l) lane-padded
    est = 2 * per_step + scratch                       # double-buffered blocks
    return int(min(64 * 1024 * 1024, max(16 * 1024 * 1024, 4 * est)))


def als_conv_layer(x, edge_index, edge_attr, params, *, heads, alpha, residual):
    """x: [N, Din] f32, edge_index: [2, E] i32 (src, dst), edge_attr: [E, Din]."""
    n, din = x.shape
    dout = params["wq"].shape[1]
    if dout % heads:
        raise ValueError("dim_out must be divisible by heads")
    hd = dout // heads
    if residual and din != dout:
        raise ValueError("residual add requires dim_in == dim_out")

    # ---- tiling (single block for tiny graphs, 128x128 tiles otherwise) -----
    if n <= 128:
        n_pad = _round_up(n, 8)
        tq = tk = n_pad
    else:
        tq = tk = 128
        n_pad = _round_up(n, 128)
    grid = (n_pad // tq, n_pad // tk)

    # ---- JAX glue (trace-time): densify graph, fold mask into the bias ------
    # NOTE: for best throughput callers should batch/concatenate graphs so the
    # node dimension per pallas_call is >= 128 (toy 16-node graphs are
    # fixed-overhead bound).
    src, dst = edge_index[0], edge_index[1]
    adj = jnp.zeros((n_pad, n_pad), jnp.float32).at[dst, src].max(1.0)
    # TODO(synk): duplicate edges accumulate their bias (sum); reference MAPR
    #             semantics for duplicate edges are unknown.
    eb_edge = edge_attr.astype(jnp.float32) @ params["we"]                # [E, H]
    ebias = jnp.zeros((heads, n_pad, n_pad), jnp.float32).at[:, dst, src].add(eb_edge.T)
    ebias = jnp.where(adj[None] > 0, ebias, jnp.float32(_MASK_VALUE))
    ebias = ebias.astype(jnp.bfloat16)            # halves the dominant HBM traffic

    x_pad = jnp.zeros((n_pad, din), jnp.float32).at[:n].set(x.astype(jnp.float32))

    # ---- fold q/k projections into A_h = scale * Wq_h @ Wk_h^T --------------
    scale = 1.0 / (hd ** 0.5)
    wq_h = params["wq"].reshape(din, heads, hd).transpose(1, 0, 2)        # [H, Din, hd]
    wk_h = params["wk"].reshape(din, heads, hd).transpose(1, 0, 2)
    a_mat = jnp.einsum("hde,hfe->hdf", wq_h, wk_h) * jnp.float32(scale)   # [H, Din, Din]
    # value projection per head, placed into that head's Dout lane band
    wv_h = params["wv"].reshape(din, heads, hd).transpose(1, 0, 2)        # [H, Din, hd]
    wv_placed = jnp.zeros((heads, din, dout), jnp.float32)
    for h in range(heads):
        wv_placed = wv_placed.at[h, :, h * hd:(h + 1) * hd].set(wv_h[h])

    kernel = functools.partial(_als_conv_kernel, alpha=float(alpha),
                               residual=bool(residual))
    out = pl.pallas_call(
        kernel,
        out_shape=jax.ShapeDtypeStruct((n_pad, dout), x.dtype),
        grid_spec=pltpu.PrefetchScalarGridSpec(
            num_scalar_prefetch=0,
            grid=grid,
            in_specs=[
                pl.BlockSpec((tq, din), lambda qi, ki: (qi, 0)),            # x (q rows)
                pl.BlockSpec((tk, din), lambda qi, ki: (ki, 0)),            # x (kv rows)
                pl.BlockSpec((heads, tq, tk), lambda qi, ki: (0, qi, ki)),  # bias+mask
                pl.BlockSpec((heads, din, din), lambda qi, ki: (0, 0, 0)),  # A
                pl.BlockSpec((heads, din, dout), lambda qi, ki: (0, 0, 0)), # Wv placed
                pl.BlockSpec((din, dout), lambda qi, ki: (0, 0)),           # Wskip
            ],
            out_specs=pl.BlockSpec((tq, dout), lambda qi, ki: (qi, 0)),
            scratch_shapes=[
                pltpu.VMEM((heads, tq, 1), jnp.float32),     # running max
                pltpu.VMEM((heads, tq, 1), jnp.float32),     # running denom
                pltpu.VMEM((heads, tq, dout), jnp.float32),  # running numerator
            ],
        ),
        compiler_params=pltpu.CompilerParams(
            dimension_semantics=("parallel", "arbitrary"),
            vmem_limit_bytes=_vmem_limit_bytes(tq, tk, din, dout, heads),
        ),
    )(x_pad, x_pad, ebias, a_mat, wv_placed, params["wskip"])
    return out[:n]


def init_params(key, dim_in, dim_out, heads):
    ks = jax.random.split(key, 5)
    s_in = 1.0 / jnp.sqrt(jnp.float32(dim_in))
    return {
        "wq":    jax.random.normal(ks[0], (dim_in, dim_out), jnp.float32) * s_in,
        "wk":    jax.random.normal(ks[1], (dim_in, dim_out), jnp.float32) * s_in,
        "wv":    jax.random.normal(ks[2], (dim_in, dim_out), jnp.float32) * s_in,
        "wskip": jax.random.normal(ks[3], (dim_in, dim_out), jnp.float32) * s_in,
        "we":    jax.random.normal(ks[4], (dim_in, heads),   jnp.float32) * s_in,
    }


def _reference(x, edge_index, edge_attr, params, *, heads, alpha, residual):
    """Pure-JAX reference with identical stand-in semantics (for self-check)."""
    n, _ = x.shape
    dout = params["wq"].shape[1]
    hd = dout // heads
    src, dst = edge_index[0], edge_index[1]
    adj = jnp.zeros((n, n), jnp.float32).at[dst, src].max(1.0)
    eb = edge_attr.astype(jnp.float32) @ params["we"]
    ebias = jnp.zeros((heads, n, n), jnp.float32).at[:, dst, src].add(eb.T)
    ebias = jnp.where(adj[None] > 0, ebias, jnp.float32(_MASK_VALUE))
    ebias = ebias.astype(jnp.bfloat16).astype(jnp.float32)
    q = (x @ params["wq"]).reshape(n, heads, hd).transpose(1, 0, 2)
    k = (x @ params["wk"]).reshape(n, heads, hd).transpose(1, 0, 2)
    v = (x @ params["wv"]).reshape(n, heads, hd).transpose(1, 0, 2)
    logits = jnp.einsum("hqe,hke->hqk", q, k) / jnp.sqrt(jnp.float32(hd)) + ebias
    m = logits.max(-1, keepdims=True)
    p = jnp.exp(logits - m)
    attn = jnp.where(m > _VALID_THRESH, p / p.sum(-1, keepdims=True), 0.0)
    agg = jnp.einsum("hqk,hke->hqe", attn, v).transpose(1, 0, 2).reshape(n, dout)
    y = alpha * (x @ params["wskip"]) + (1.0 - alpha) * agg
    y = jnp.maximum(y, 0.0)
    if residual:
        y = x + y
    return y


if __name__ == "__main__":
    ALPHA, RESIDUAL, HEADS = 0.1, True, 4

    key = jax.random.PRNGKey(0)
    # (N=16: single-block path; N=200: 2x2 tiled online-softmax path.)
    for (N, DIM, E) in [(16, 32, 48), (200, 32, 800)]:
        key, kx, ke, ka, kp = jax.random.split(key, 5)
        x = jax.random.normal(kx, (N, DIM), jnp.float32)
        edge_index = jax.random.randint(ke, (2, E), 0, N, dtype=jnp.int32)
        edge_attr = jax.random.normal(ka, (E, DIM), jnp.float32)
        params = init_params(kp, DIM, DIM, HEADS)

        out = als_conv_layer(x, edge_index, edge_attr, params,
                             heads=HEADS, alpha=ALPHA, residual=RESIDUAL)
        jax.block_until_ready(out)
        assert out.shape == (N, DIM) and out.dtype == jnp.float32

        ref = _reference(x, edge_index, edge_attr, params,
                         heads=HEADS, alpha=ALPHA, residual=RESIDUAL)
        err = float(jnp.max(jnp.abs(out - ref)))
        assert jnp.allclose(out, ref, rtol=3e-2, atol=3e-2), err

    print("KERNEL_OK")
</pallas_src>

<mosaic_0001>
module attributes {stable_mosaic.version = 11 : i64} {
  func.func @_als_conv_kernel(%arg0: i32, %arg1: i32, %arg2: memref<16x32xf32, #tpu.memory_space<vmem>>, %arg3: memref<16x32xf32, #tpu.memory_space<vmem>>, %arg4: memref<4x16x16xbf16, #tpu.memory_space<vmem>>, %arg5: memref<4x32x32xf32, #tpu.memory_space<vmem>>, %arg6: memref<4x32x32xf32, #tpu.memory_space<vmem>>, %arg7: memref<32x32xf32, #tpu.memory_space<vmem>>, %arg8: memref<16x32xf32, #tpu.memory_space<vmem>>, %arg9: memref<4x16x1xf32, #tpu.memory_space<vmem>>, %arg10: memref<4x16x1xf32, #tpu.memory_space<vmem>>, %arg11: memref<4x16x32xf32, #tpu.memory_space<vmem>>) attributes {dimension_semantics = [#tpu.dimension_semantics<parallel>, #tpu.dimension_semantics<arbitrary>], iteration_bounds = array<i64: 1, 1>, scalar_prefetch = 0 : i64, scratch_operands = 3 : i64, tpu.core_type = #tpu.core_type<tc>, window_params = [{transform_indices = @transform_0, window_bounds = array<i64: 16, 32>}, {transform_indices = @transform_1, window_bounds = array<i64: 16, 32>}, {transform_indices = @transform_2, window_bounds = array<i64: 4, 16, 16>}, {pipeline_mode = #tpu.pipeline_mode<synchronous>, transform_indices = @transform_3, window_bounds = array<i64: 4, 32, 32>}, {pipeline_mode = #tpu.pipeline_mode<synchronous>, transform_indices = @transform_4, window_bounds = array<i64: 4, 32, 32>}, {pipeline_mode = #tpu.pipeline_mode<synchronous>, transform_indices = @transform_5, window_bounds = array<i64: 32, 32>}, {transform_indices = @transform_6, window_bounds = array<i64: 16, 32>}]} {
    %c0_i32 = arith.constant 0 : i32
    %0 = arith.cmpi eq, %arg1, %c0_i32 : i32
    %1 = arith.extui %0 : i1 to i32
    %c0_i32_0 = arith.constant 0 : i32
    %2 = arith.cmpi ne, %1, %c0_i32_0 : i32
    scf.if %2 {
      %cst_38 = arith.constant 0xFF800000 : f32
      %44 = vector.broadcast %cst_38 : f32 to vector<4x16x1xf32>
      %c0_39 = arith.constant 0 : index
      %c0_40 = arith.constant 0 : index
      %c0_41 = arith.constant 0 : index
      %45 = vector.load %arg9[%c0_39, %c0_40, %c0_41] : memref<4x16x1xf32, #tpu.memory_space<vmem>>, vector<4x16x1xf32>
      tpu.vector_store %arg9[%c0_39, %c0_40, %c0_41], %44 {strides = array<i32>} : memref<4x16x1xf32, #tpu.memory_space<vmem>>, vector<4x16x1xf32>,
      %cst_42 = arith.constant 0.000000e+00 : f32
      %46 = vector.broadcast %cst_42 : f32 to vector<4x16x1xf32>
      %c0_43 = arith.constant 0 : index
      %c0_44 = arith.constant 0 : index
      %c0_45 = arith.constant 0 : index
      %47 = vector.load %arg10[%c0_43, %c0_44, %c0_45] : memref<4x16x1xf32, #tpu.memory_space<vmem>>, vector<4x16x1xf32>
      tpu.vector_store %arg10[%c0_43, %c0_44, %c0_45], %46 {strides = array<i32>} : memref<4x16x1xf32, #tpu.memory_space<vmem>>, vector<4x16x1xf32>,
      %cst_46 = arith.constant 0.000000e+00 : f32
      %48 = vector.broadcast %cst_46 : f32 to vector<4x16x32xf32>
      %c0_47 = arith.constant 0 : index
      %c0_48 = arith.constant 0 : index
      %c0_49 = arith.constant 0 : index
      %49 = vector.load %arg11[%c0_47, %c0_48, %c0_49] : memref<4x16x32xf32, #tpu.memory_space<vmem>>, vector<4x16x32xf32>
      tpu.vector_store %arg11[%c0_47, %c0_48, %c0_49], %48 {strides = array<i32>} : memref<4x16x32xf32, #tpu.memory_space<vmem>>, vector<4x16x32xf32>,
    } else {
    }
    %c0 = arith.constant 0 : index
    %c0_1 = arith.constant 0 : index
    %3 = vector.load %arg2[%c0, %c0_1] : memref<16x32xf32, #tpu.memory_space<vmem>>, vector<16x32xf32>
    %c0_2 = arith.constant 0 : index
    %c0_3 = arith.constant 0 : index
    %4 = vector.load %arg3[%c0_2, %c0_3] : memref<16x32xf32, #tpu.memory_space<vmem>>, vector<16x32xf32>
    %5 = vector.shape_cast %3 : vector<16x32xf32> to vector<1x16x32xf32>
    %6 = vector.shape_cast %5 : vector<1x16x32xf32> to vector<1x16x32xf32>
    %7 = vector.broadcast %6 : vector<1x16x32xf32> to vector<4x16x32xf32>
    %8 = vector.shape_cast %4 : vector<16x32xf32> to vector<1x16x32xf32>
    %9 = vector.shape_cast %8 : vector<1x16x32xf32> to vector<1x16x32xf32>
    %10 = vector.broadcast %9 : vector<1x16x32xf32> to vector<4x16x32xf32>
    %c0_4 = arith.constant 0 : index
    %c0_5 = arith.constant 0 : index
    %c0_6 = arith.constant 0 : index
    %11 = vector.load %arg5[%c0_4, %c0_5, %c0_6] : memref<4x32x32xf32, #tpu.memory_space<vmem>>, vector<4x32x32xf32>
    "tpu.trace_start"() <{level = 10 : i32, message = "hdf,hkf->hdk"}> : () -> ()
    %cst = arith.constant dense<0.000000e+00> : vector<4x32x16xf32>
    %12 = tpu.matmul %11, %10, %cst {dimension_numbers = #tpu.dot_dimension_numbers<[2], [2], [1], [1], [0, 0, 0, 1, 1, 1], [0], [0]>} : vector<4x32x32xf32>, vector<4x16x32xf32>, vector<4x32x16xf32> -> vector<4x32x16xf32>
    "tpu.trace_stop"() : () -> ()
    "tpu.trace_start"() <{level = 10 : i32, message = "hqd,hdk->hqk"}> : () -> ()
    %cst_7 = arith.constant dense<0.000000e+00> : vector<4x16x16xf32>
    %13 = tpu.matmul %7, %12, %cst_7 {dimension_numbers = #tpu.dot_dimension_numbers<[2], [1], [1], [2], [0, 0, 0, 1, 1, 2], [0], [0]>} : vector<4x16x32xf32>, vector<4x32x16xf32>, vector<4x16x16xf32> -> vector<4x16x16xf32>
    "tpu.trace_stop"() : () -> ()
    %c0_8 = arith.constant 0 : index
    %c0_9 = arith.constant 0 : index
    %c0_10 = arith.constant 0 : index
    %14 = vector.load %arg4[%c0_8, %c0_9, %c0_10] : memref<4x16x16xbf16, #tpu.memory_space<vmem>>, vector<4x16x16xbf16>
    %15 = arith.extf %14 : vector<4x16x16xbf16> to vector<4x16x16xf32>
    %16 = arith.addf %13, %15 : vector<4x16x16xf32>
    %c0_11 = arith.constant 0 : index
    %c0_12 = arith.constant 0 : index
    %c0_13 = arith.constant 0 : index
    %17 = vector.load %arg9[%c0_11, %c0_12, %c0_13] : memref<4x16x1xf32, #tpu.memory_space<vmem>>, vector<4x16x1xf32>
    %cst_14 = arith.constant dense<0xFF800000> : vector<4x16xf32>
    %18 = vector.multi_reduction <maximumf>, %16, %cst_14 [2] : vector<4x16x16xf32> to vector<4x16xf32>
    %19 = vector.shape_cast %18 : vector<4x16xf32> to vector<4x16x1xf32>
    %20 = arith.maximumf %17, %19 : vector<4x16x1xf32>
    %21 = arith.subf %17, %20 : vector<4x16x1xf32>
    %22 = math.exp %21 : vector<4x16x1xf32>
    %23 = vector.broadcast %20 : vector<4x16x1xf32> to vector<4x16x16xf32>
    %24 = arith.subf %16, %23 : vector<4x16x16xf32>
    %25 = math.exp %24 : vector<4x16x16xf32>
    %c0_15 = arith.constant 0 : index
    %c0_16 = arith.constant 0 : index
    %c0_17 = arith.constant 0 : index
    %26 = vector.load %arg10[%c0_15, %c0_16, %c0_17] : memref<4x16x1xf32, #tpu.memory_space<vmem>>, vector<4x16x1xf32>
    %27 = arith.mulf %22, %26 : vector<4x16x1xf32>
    %cst_18 = arith.constant dense<0.000000e+00> : vector<4x16xf32>
    %28 = vector.multi_reduction <add>, %25, %cst_18 [2] : vector<4x16x16xf32> to vector<4x16xf32>
    %29 = vector.shape_cast %28 : vector<4x16xf32> to vector<4x16x1xf32>
    %30 = arith.addf %27, %29 : vector<4x16x1xf32>
    %c0_19 = arith.constant 0 : index
    %c0_20 = arith.constant 0 : index
    %c0_21 = arith.constant 0 : index
    %31 = vector.load %arg10[%c0_19, %c0_20, %c0_21] : memref<4x16x1xf32, #tpu.memory_space<vmem>>, vector<4x16x1xf32>
    tpu.vector_store %arg10[%c0_19, %c0_20, %c0_21], %30 {strides = array<i32>} : memref<4x16x1xf32, #tpu.memory_space<vmem>>, vector<4x16x1xf32>,
    %c0_22 = arith.constant 0 : index
    %c0_23 = arith.constant 0 : index
    %c0_24 = arith.constant 0 : index
    %32 = vector.load %arg6[%c0_22, %c0_23, %c0_24] : memref<4x32x32xf32, #tpu.memory_space<vmem>>, vector<4x32x32xf32>
    "tpu.trace_start"() <{level = 10 : i32, message = "hkd,hdf->hkf"}> : () -> ()
    %cst_25 = arith.constant dense<0.000000e+00> : vector<4x16x32xf32>
    %33 = tpu.matmul %10, %32, %cst_25 {dimension_numbers = #tpu.dot_dimension_numbers<[2], [1], [1], [2], [0, 0, 0, 1, 1, 2], [0], [0]>} : vector<4x16x32xf32>, vector<4x32x32xf32>, vector<4x16x32xf32> -> vector<4x16x32xf32>
    "tpu.trace_stop"() : () -> ()
    %c0_26 = arith.constant 0 : index
    %c0_27 = arith.constant 0 : index
    %c0_28 = arith.constant 0 : index
    %34 = vector.load %arg11[%c0_26, %c0_27, %c0_28] : memref<4x16x32xf32, #tpu.memory_space<vmem>>, vector<4x16x32xf32>
    %35 = vector.broadcast %22 : vector<4x16x1xf32> to vector<4x16x32xf32>
    %36 = arith.mulf %35, %34 : vector<4x16x32xf32>
    "tpu.trace_start"() <{level = 10 : i32, message = "hqk,hkf->hqf"}> : () -> ()
    %cst_29 = arith.constant dense<0.000000e+00> : vector<4x16x32xf32>
    %37 = tpu.matmul %25, %33, %cst_29 {dimension_numbers = #tpu.dot_dimension_numbers<[2], [1], [1], [2], [0, 0, 0, 1, 1, 2], [0], [0]>} : vector<4x16x16xf32>, vector<4x16x32xf32>, vector<4x16x32xf32> -> vector<4x16x32xf32>
    "tpu.trace_stop"() : () -> ()
    %38 = arith.addf %36, %37 : vector<4x16x32xf32>
    %c0_30 = arith.constant 0 : index
    %c0_31 = arith.constant 0 : index
    %c0_32 = arith.constant 0 : index
    %39 = vector.load %arg11[%c0_30, %c0_31, %c0_32] : memref<4x16x32xf32, #tpu.memory_space<vmem>>, vector<4x16x32xf32>
    tpu.vector_store %arg11[%c0_30, %c0_31, %c0_32], %38 {strides = array<i32>} : memref<4x16x32xf32, #tpu.memory_space<vmem>>, vector<4x16x32xf32>,
    %c0_33 = arith.constant 0 : index
    %c0_34 = arith.constant 0 : index
    %c0_35 = arith.constant 0 : index
    %40 = vector.load %arg9[%c0_33, %c0_34, %c0_35] : memref<4x16x1xf32, #tpu.memory_space<vmem>>, vector<4x16x1xf32>
    tpu.vector_store %arg9[%c0_33, %c0_34, %c0_35], %20 {strides = array<i32>} : memref<4x16x1xf32, #tpu.memory_space<vmem>>, vector<4x16x1xf32>,
    %c0_i32_36 = arith.constant 0 : i32
    %41 = arith.cmpi eq, %arg1, %c0_i32_36 : i32
    %42 = arith.extui %41 : i1 to i32
    %c0_i32_37 = arith.constant 0 : i32
    %43 = arith.cmpi ne, %42, %c0_i32_37 : i32
    scf.if %43 {
      %c0_38 = arith.constant 0 : index
      %c0_39 = arith.constant 0 : index
      %c0_40 = arith.constant 0 : index
      %44 = vector.load %arg10[%c0_38, %c0_39, %c0_40] : memref<4x16x1xf32, #tpu.memory_space<vmem>>, vector<4x16x1xf32>
      %45 = tpu.reciprocal %44 {approx = true} : vector<4x16x1xf32> -> vector<4x16x1xf32>
      %c0_41 = arith.constant 0 : index
      %c0_42 = arith.constant 0 : index
      %c0_43 = arith.constant 0 : index
      %46 = vector.load %arg9[%c0_41, %c0_42, %c0_43] : memref<4x16x1xf32, #tpu.memory_space<vmem>>, vector<4x16x1xf32>
      %cst_44 = arith.constant -1.000000e+29 : f32
      %47 = vector.broadcast %cst_44 : f32 to vector<4x16x1xf32>
      %48 = arith.cmpf ogt, %46, %47 : vector<4x16x1xf32>
      %c0_45 = arith.constant 0 : index
      %c0_46 = arith.constant 0 : index
      %c0_47 = arith.constant 0 : index
      %49 = vector.load %arg11[%c0_45, %c0_46, %c0_47] : memref<4x16x32xf32, #tpu.memory_space<vmem>>, vector<4x16x32xf32>
      %50 = vector.broadcast %45 : vector<4x16x1xf32> to vector<4x16x32xf32>
      %51 = arith.mulf %49, %50 : vector<4x16x32xf32>
      %cst_48 = arith.constant 0.000000e+00 : f32
      %52 = vector.shape_cast %48 : vector<4x16x1xi1> to vector<4x16x1xi1>
      %53 = vector.broadcast %52 : vector<4x16x1xi1> to vector<4x16x32xi1>
      %54 = vector.broadcast %cst_48 : f32 to vector<4x16x32xf32>
      %55 = arith.select %53, %51, %54 : vector<4x16x32xi1>, vector<4x16x32xf32>
      %cst_49 = arith.constant dense<0.000000e+00> : vector<16x32xf32>
      %56 = vector.multi_reduction <add>, %55, %cst_49 [0] : vector<4x16x32xf32> to vector<16x32xf32>
      %c0_50 = arith.constant 0 : index
      %c0_51 = arith.constant 0 : index
      %57 = vector.load %arg7[%c0_50, %c0_51] : memref<32x32xf32, #tpu.memory_space<vmem>>, vector<32x32xf32>
      %cst_52 = arith.constant dense<0.000000e+00> : vector<16x32xf32>
      %58 = tpu.matmul %3, %57, %cst_52 {dimension_numbers = #tpu.dot_dimension_numbers<[1], [0], [0], [1], [0, 0, 1, 1], [], []>} : vector<16x32xf32>, vector<32x32xf32>, vector<16x32xf32> -> vector<16x32xf32>
      %cst_53 = arith.constant 1.000000e-01 : f32
      %59 = vector.broadcast %cst_53 : f32 to vector<16x32xf32>
      %60 = arith.mulf %59, %58 : vector<16x32xf32>
      %cst_54 = arith.constant 0.899999976 : f32
      %61 = vector.broadcast %cst_54 : f32 to vector<16x32xf32>
      %62 = arith.mulf %61, %56 : vector<16x32xf32>
      %63 = arith.addf %60, %62 : vector<16x32xf32>
      %cst_55 = arith.constant 0.000000e+00 : f32
      %64 = vector.broadcast %cst_55 : f32 to vector<16x32xf32>
      %65 = arith.maximumf %63, %64 : vector<16x32xf32>
      %66 = arith.addf %3, %65 : vector<16x32xf32>
      %c0_56 = arith.constant 0 : index
      %c0_57 = arith.constant 0 : index
      %67 = vector.load %arg8[%c0_56, %c0_57] : memref<16x32xf32, #tpu.memory_space<vmem>>, vector<16x32xf32>
      tpu.vector_store %arg8[%c0_56, %c0_57], %66 {strides = array<i32>} : memref<16x32xf32, #tpu.memory_space<vmem>>, vector<16x32xf32>,
    } else {
    }
    return
  }
  func.func @transform_0(%arg0: i32, %arg1: i32) -> (i32, i32) {
    %c0_i32 = arith.constant 0 : i32
    %c0_i32_0 = arith.constant 0 : i32
    return %arg0, %c0_i32 : i32, i32
  }
  func.func @transform_1(%arg0: i32, %arg1: i32) -> (i32, i32) {
    %c0_i32 = arith.constant 0 : i32
    %c0_i32_0 = arith.constant 0 : i32
    return %arg1, %c0_i32 : i32, i32
  }
  func.func @transform_2(%arg0: i32, %arg1: i32) -> (i32, i32, i32) {
    %c0_i32 = arith.constant 0 : i32
    %c0_i32_0 = arith.constant 0 : i32
    return %c0_i32, %arg0, %arg1 : i32, i32, i32
  }
  func.func @transform_3(%arg0: i32, %arg1: i32) -> (i32, i32, i32) {
    %c0_i32 = arith.constant 0 : i32
    %c0_i32_0 = arith.constant 0 : i32
    %c0_i32_1 = arith.constant 0 : i32
    %c0_i32_2 = arith.constant 0 : i32
    return %c0_i32, %c0_i32_0, %c0_i32_1 : i32, i32, i32
  }
  func.func @transform_4(%arg0: i32, %arg1: i32) -> (i32, i32, i32) {
    %c0_i32 = arith.constant 0 : i32
    %c0_i32_0 = arith.constant 0 : i32
    %c0_i32_1 = arith.constant 0 : i32
    %c0_i32_2 = arith.constant 0 : i32
    return %c0_i32, %c0_i32_0, %c0_i32_1 : i32, i32, i32
  }
  func.func @transform_5(%arg0: i32, %arg1: i32) -> (i32, i32) {
    %c0_i32 = arith.constant 0 : i32
    %c0_i32_0 = arith.constant 0 : i32
    %c0_i32_1 = arith.constant 0 : i32
    return %c0_i32, %c0_i32_0 : i32, i32
  }
  func.func @transform_6(%arg0: i32, %arg1: i32) -> (i32, i32) {
    %c0_i32 = arith.constant 0 : i32
    %c0_i32_0 = arith.constant 0 : i32
    return %arg0, %c0_i32 : i32, i32
  }
}

</mosaic_0001>

<llo_original>
// kernel: tpu_custom_call.1
$region0: #{tpu_custom_call.1}
  #allocation0 [shape = 'u32[]', space=smem, size = 0x4, offset = 0x4, fixed_abs, tag = 'smem constant byte address 0x4 - core index']
  #allocation1 [shape = 'u32[144,128]{1,0:T(1,128)}', space=vmem, size = 0x12000, scoped, tag = 'internal scratch']
  #allocation2 [shape = 'f32[4,16,1]{2,1,0:T(8,128)}', space=vmem, size = 0x8000, scoped, tag = 'scratch operand']
  #allocation3 [shape = 'f32[4,16,1]{2,1,0:T(8,128)}', space=vmem, size = 0x8000, scoped, tag = 'scratch operand']
  #allocation4 [shape = 'f32[4,16,32]{2,1,0:T(8,128)}', space=vmem, size = 0x8000, scoped, tag = 'scratch operand']
  %s0 = inlined_call_operand.hbm [shape: f32[16,32], index: 0, kind: input, shape index: {}]
  %s1 = inlined_call_operand.hbm [shape: f32[16,32], index: 1, kind: input, shape index: {}]
  %s2 = inlined_call_operand.hbm [shape: bf16[4,16,16], index: 2, kind: input, shape index: {}]
  %s3 = inlined_call_operand.hbm [shape: f32[4,32,32], index: 3, kind: input, shape index: {}]
  %s4 = inlined_call_operand.hbm [shape: f32[4,32,32], index: 4, kind: input, shape index: {}]
  %s5 = inlined_call_operand.hbm [shape: f32[32,32], index: 5, kind: input, shape index: {}]
  %s6 = inlined_call_operand.hbm [shape: f32[16,32], index: 6, kind: output, shape index: {}]
  %s7 = sld [smem:[#allocation0]]
  $region66: #{tpu_custom_call.1} parent=0
    _
  %s9 = ssub.s32 1, %s7
  %s10 = scalar_select 0, %s9, %s7
  $region1: #{tpu_custom_call.1} parent=0
    #allocation5 [shape = 'u8[8192]{0}', space=vmem, size = 0x2000, scoped, tag = 'input window, operand 0, single buffered']
    #allocation6 [shape = 's32[1]{0}', space=sflag, size = 0x4, scoped, tag = 'scoped memory for tpu_custom_call.1']
    #allocation7 [shape = 's32[1]{0}', space=sflag, size = 0x4, scoped, tag = 'scoped memory for tpu_custom_call.1']
    #allocation8 [shape = 'u8[8192]{0}', space=vmem, size = 0x2000, scoped, tag = 'input window, operand 1, single buffered']
    #allocation9 [shape = 's32[1]{0}', space=sflag, size = 0x4, scoped, tag = 'scoped memory for tpu_custom_call.1']
    #allocation10 [shape = 'u8[16384]{0}', space=vmem, size = 0x4000, scoped, tag = 'input window, operand 2, single buffered']
    #allocation11 [shape = 'u8[65536]{0}', space=vmem, size = 0x10000, scoped, tag = 'input window, operand 3, single buffered']
    #allocation12 [shape = 's32[1]{0}', space=sflag, size = 0x4, scoped, tag = 'scoped memory for tpu_custom_call.1']
    #allocation13 [shape = 'u8[65536]{0}', space=vmem, size = 0x10000, scoped, tag = 'input window, operand 4, single buffered']
    #allocation14 [shape = 'u8[16384]{0}', space=vmem, size = 0x4000, scoped, tag = 'input window, operand 5, single buffered']
    #allocation15 [shape = 's32[1]{0}', space=sflag, size = 0x4, scoped, tag = 'scoped memory for tpu_custom_call.1']
    #allocation16 [shape = 'u8[8192]{0}', space=vmem, size = 0x2000, scoped, tag = 'output window, operand 0, single buffered']
    %11 = vsyncpa [#allocation6], 0
    %12 = vsyncpa [#allocation9], 0
    %13 = vsyncpa [#allocation12], 0
    %14 = vsyncpa [#allocation15], 0
    %15 = vsyncpa [#allocation7], 0
    // Predicated region
    $region2: #{tpu_custom_call.1} parent=1 // pred_check
      _
    $region3: #{tpu_custom_call.1} parent=1 // pred_check_branch
      %17 = sbr.rel (0) target = $region5
    $region4: #{tpu_custom_call.1} parent=1 // pred_region
      %s19 = ssub.s32 256, 256
      %20 = vsyncadd [#allocation6], %s19
      %s21 = sshll.u32 [#allocation5], 4
      %s22 = int_to_ptr.vmem [resolvable:$true] %s21
      %27 = dma.hbm_to_vmem [thread:$0]  %s0, 256, %s22, [#allocation6], 128, 128, 8
    $region5: #{tpu_custom_call.1} parent=1 // pred_fallthru
      _
    // Predicated region
    $region6: #{tpu_custom_call.1} parent=1 // pred_check
      _
    $region7: #{tpu_custom_call.1} parent=1 // pred_check_branch
      %29 = sbr.rel (0) target = $region9
    $region8: #{tpu_custom_call.1} parent=1 // pred_region
      %s31 = ssub.s32 256, 256
      %32 = vsyncadd [#allocation9], %s31
      %s33 = sshll.u32 [#allocation8], 4
      %s34 = int_to_ptr.vmem [resolvable:$true] %s33
      %39 = dma.hbm_to_vmem [thread:$0]  %s1, 256, %s34, [#allocation9], 128, 128, 8
    $region9: #{tpu_custom_call.1} parent=1 // pred_fallthru
      _
    // Predicated region
    $region10: #{tpu_custom_call.1} parent=1 // pred_check
      _
    $region11: #{tpu_custom_call.1} parent=1 // pred_check_branch
      %41 = sbr.rel (0) target = $region13
    $region12: #{tpu_custom_call.1} parent=1 // pred_region
      %s43 = ssub.s32 512, 512
      %44 = vsyncadd [#allocation9], %s43
      %s45 = sshll.u32 [#allocation10], 4
      %s46 = int_to_ptr.vmem [resolvable:$true] %s45
      %51 = dma.hbm_to_vmem [thread:$0]  %s2, 512, %s46, [#allocation9], 64, 64, 4
    $region13: #{tpu_custom_call.1} parent=1 // pred_fallthru
      _
    // Predicated region
    $region14: #{tpu_custom_call.1} parent=1 // pred_check
      _
    $region15: #{tpu_custom_call.1} parent=1 // pred_check_branch
      %53 = sbr.rel (0) target = $region17
    $region16: #{tpu_custom_call.1} parent=1 // pred_region
      %s55 = ssub.s32 2048, 2048
      %56 = vsyncadd [#allocation12], %s55
      %s57 = sshll.u32 [#allocation11], 4
      %s58 = int_to_ptr.vmem [resolvable:$true] %s57
      %63 = dma.hbm_to_vmem [thread:$0]  %s3, 2048, %s58, [#allocation12], 128, 128, 8
    $region17: #{tpu_custom_call.1} parent=1 // pred_fallthru
      _
    // Predicated region
    $region18: #{tpu_custom_call.1} parent=1 // pred_check
      _
    $region19: #{tpu_custom_call.1} parent=1 // pred_check_branch
      %65 = sbr.rel (0) target = $region21
    $region20: #{tpu_custom_call.1} parent=1 // pred_region
      %s67 = ssub.s32 2048, 2048
      %68 = vsyncadd [#allocation12], %s67
      %s69 = sshll.u32 [#allocation13], 4
      %s70 = int_to_ptr.vmem [resolvable:$true] %s69
      %75 = dma.hbm_to_vmem [thread:$0]  %s4, 2048, %s70, [#allocation12], 128, 128, 8
    $region21: #{tpu_custom_call.1} parent=1 // pred_fallthru
      _
    // Predicated region
    $region22: #{tpu_custom_call.1} parent=1 // pred_check
      _
    $region23: #{tpu_custom_call.1} parent=1 // pred_check_branch
      %77 = sbr.rel (0) target = $region25
    $region24: #{tpu_custom_call.1} parent=1 // pred_region
      %s79 = ssub.s32 512, 512
      %80 = vsyncadd [#allocation15], %s79
      %s81 = sshll.u32 [#allocation14], 4
      %s82 = int_to_ptr.vmem [resolvable:$true] %s81
      %87 = dma.hbm_to_vmem [thread:$0]  %s5, 512, %s82, [#allocation15], 128, 128, 8
    $region25: #{tpu_custom_call.1} parent=1 // pred_fallthru
      _
    // Predicated region
    $region26: #{tpu_custom_call.1} parent=1 // pred_check
      _
    $region27: #{tpu_custom_call.1} parent=1 // pred_check_branch
      %89 = sbr.rel (0) target = $region29
    $region28: #{tpu_custom_call.1} parent=1 // pred_region
      %90 = dma.done [#allocation6], 256
    $region29: #{tpu_custom_call.1} parent=1 // pred_fallthru
      _
    // Predicated region
    $region30: #{tpu_custom_call.1} parent=1 // pred_check
      _
    $region31: #{tpu_custom_call.1} parent=1 // pred_check_branch
      %92 = sbr.rel (0) target = $region33
    $region32: #{tpu_custom_call.1} parent=1 // pred_region
      %93 = dma.done [#allocation9], 256
    $region33: #{tpu_custom_call.1} parent=1 // pred_fallthru
      _
    // Predicated region
    $region34: #{tpu_custom_call.1} parent=1 // pred_check
      _
    $region35: #{tpu_custom_call.1} parent=1 // pred_check_branch
      %95 = sbr.rel (0) target = $region37
    $region36: #{tpu_custom_call.1} parent=1 // pred_region
      %96 = dma.done [#allocation9], 512
    $region37: #{tpu_custom_call.1} parent=1 // pred_fallthru
      _
    // Predicated region
    $region38: #{tpu_custom_call.1} parent=1 // pred_check
      _
    $region39: #{tpu_custom_call.1} parent=1 // pred_check_branch
      %98 = sbr.rel (0) target = $region41
    $region40: #{tpu_custom_call.1} parent=1 // pred_region
      %99 = dma.done [#allocation12], 2048
    $region41: #{tpu_custom_call.1} parent=1 // pred_fallthru
      _
    // Predicated region
    $region42: #{tpu_custom_call.1} parent=1 // pred_check
      _
    $region43: #{tpu_custom_call.1} parent=1 // pred_check_branch
      %101 = sbr.rel (0) target = $region45
    $region44: #{tpu_custom_call.1} parent=1 // pred_region
      %102 = dma.done [#allocation12], 2048
    $region45: #{tpu_custom_call.1} parent=1 // pred_fallthru
      _
    // Predicated region
    $region46: #{tpu_custom_call.1} parent=1 // pred_check
      _
    $region47: #{tpu_custom_call.1} parent=1 // pred_check_branch
      %104 = sbr.rel (0) target = $region49
    $region48: #{tpu_custom_call.1} parent=1 // pred_region
      %105 = dma.done [#allocation15], 512
    $region49: #{tpu_custom_call.1} parent=1 // pred_fallthru
      _
    %p106 = scmp.eq.s32.totalorder 0, 0
    // Predicated region
    $region50: #{tpu_custom_call.1} parent=1 // pred_check
      %p107 = pneg %p106
    $region51: #{tpu_custom_call.1} parent=1 // pred_check_branch
      %109 = sbr.rel (%p107) target = $region53
    $region52: #{tpu_custom_call.1} parent=1 // pred_region
      %vm110 = vcmask 7168
      %111 = vst.msk [vmem:[#allocation2] sm:$0xff] %vm110, -inf
      %112 = vst.msk [vmem:[#allocation2 + $0x8] sm:$0xff] %vm110, -inf
      %113 = vst.msk [vmem:[#allocation2 + $0x10] sm:$0xff] %vm110, -inf
      %114 = vst.msk [vmem:[#allocation2 + $0x18] sm:$0xff] %vm110, -inf
      %115 = vst.msk [vmem:[#allocation2 + $0x20] sm:$0xff] %vm110, -inf
      %116 = vst.msk [vmem:[#allocation2 + $0x28] sm:$0xff] %vm110, -inf
      %117 = vst.msk [vmem:[#allocation2 + $0x30] sm:$0xff] %vm110, -inf
      %118 = vst.msk [vmem:[#allocation2 + $0x38] sm:$0xff] %vm110, -inf
      %119 = vst.msk [vmem:[#allocation3] sm:$0xff] %vm110, 0.0
      %120 = vst.msk [vmem:[#allocation3 + $0x8] sm:$0xff] %vm110, 0.0
      %121 = vst.msk [vmem:[#allocation3 + $0x10] sm:$0xff] %vm110, 0.0
      %122 = vst.msk [vmem:[#allocation3 + $0x18] sm:$0xff] %vm110, 0.0
      %123 = vst.msk [vmem:[#allocation3 + $0x20] sm:$0xff] %vm110, 0.0
      %124 = vst.msk [vmem:[#allocation3 + $0x28] sm:$0xff] %vm110, 0.0
      %125 = vst.msk [vmem:[#allocation3 + $0x30] sm:$0xff] %vm110, 0.0
      %126 = vst.msk [vmem:[#allocation3 + $0x38] sm:$0xff] %vm110, 0.0
      %vm127 = vcmask 261120
      %128 = vst.msk [vmem:[#allocation4] sm:$0xff] %vm127, 0.0
      %129 = vst.msk [vmem:[#allocation4 + $0x8] sm:$0xff] %vm127, 0.0
      %130 = vst.msk [vmem:[#allocation4 + $0x10] sm:$0xff] %vm127, 0.0
      %131 = vst.msk [vmem:[#allocation4 + $0x18] sm:$0xff] %vm127, 0.0
      %132 = vst.msk [vmem:[#allocation4 + $0x20] sm:$0xff] %vm127, 0.0
      %133 = vst.msk [vmem:[#allocation4 + $0x28] sm:$0xff] %vm127, 0.0
      %134 = vst.msk [vmem:[#allocation4 + $0x30] sm:$0xff] %vm127, 0.0
      %135 = vst.msk [vmem:[#allocation4 + $0x38] sm:$0xff] %vm127, 0.0
    $region53: #{tpu_custom_call.1} parent=1 // pred_fallthru
      _
    %v136 = vld [vmem:[#allocation5] sm:$0xff]
    %v137 = vld [vmem:[#allocation5 + $0x8] sm:$0xff]
    %v138 = vld [vmem:[#allocation8] sm:$0xff]
    %v139 = vld [vmem:[#allocation8 + $0x8] sm:$0xff]
    %v140 = vld [vmem:[#allocation11] sm:$0xff]
    %v141 = vld [vmem:[#allocation11 + $0x8] sm:$0xff]
    %v142 = vld [vmem:[#allocation11 + $0x10] sm:$0xff]
    %v143 = vld [vmem:[#allocation11 + $0x18] sm:$0xff]
    %v144 = vld [vmem:[#allocation11 + $0x20] sm:$0xff]
    %v145 = vld [vmem:[#allocation11 + $0x28] sm:$0xff]
    %v146 = vld [vmem:[#allocation11 + $0x30] sm:$0xff]
    %v147 = vld [vmem:[#allocation11 + $0x38] sm:$0xff]
    %v148 = vld [vmem:[#allocation11 + $0x40] sm:$0xff]
    %v149 = vld [vmem:[#allocation11 + $0x48] sm:$0xff]
    %v150 = vld [vmem:[#allocation11 + $0x50] sm:$0xff]
    %v151 = vld [vmem:[#allocation11 + $0x58] sm:$0xff]
    %v152 = vld [vmem:[#allocation11 + $0x60] sm:$0xff]
    %v153 = vld [vmem:[#allocation11 + $0x68] sm:$0xff]
    %v154 = vld [vmem:[#allocation11 + $0x70] sm:$0xff]
    %v155 = vld [vmem:[#allocation11 + $0x78] sm:$0xff]
    %vm156 = vcmask 261120
    %v158 = vsel %vm156, %v140, 0
    %v161 = vsel %vm156, %v141, 0
    %v164 = vsel %vm156, %v142, 0
    %v167 = vsel %vm156, %v143, 0
    %v170 = vsel %vm156, %v138, 0
    %v173 = vsel %vm156, %v139, 0
    %175 = vmatprep.subr.mxu0 0.0
    %176 = vmatpush1.xpose.msra.mxu0 %v170
    %177 = vmatprep.subr.mxu0 0.0
    %178 = vmatpush1.xpose.msra.mxu0 %v173
    %179 = vmatprep.subr.mxu0 0.0
    %180 = vmatpush1.xpose.msra.mxu0 0.0
    %181 = vmatprep.subr.mxu0 0.0
    %182 = vmatpush1.xpose.msra.mxu0 0.0
    %183 = vmatprep.subr.mxu0 0.0
    %184 = vmatpush1.xpose.msra.mxu0 0.0
    %185 = vmatprep.subr.mxu0 0.0
    %186 = vmatpush1.xpose.msra.mxu0 0.0
    %187 = vmatprep.subr.mxu0 0.0
    %188 = vmatpush1.xpose.msra.mxu0 0.0
    %189 = vmatprep.subr.mxu0 0.0
    %190 = vmatpush1.xpose.msra.mxu0 0.0
    %191 = vmatprep.subr.mxu0 0.0
    %192 = vmatpush1.xpose.msra.mxu0 0.0
    %193 = vmatprep.subr.mxu0 0.0
    %194 = vmatpush1.xpose.msra.mxu0 0.0
    %195 = vmatprep.subr.mxu0 0.0
    %196 = vmatpush1.xpose.msra.mxu0 0.0
    %197 = vmatprep.subr.mxu0 0.0
    %198 = vmatpush1.xpose.msra.mxu0 0.0
    %199 = vmatprep.subr.mxu0 0.0
    %200 = vmatpush1.xpose.msra.mxu0 0.0
    %201 = vmatprep.subr.mxu0 0.0
    %202 = vmatpush1.xpose.msra.mxu0 0.0
    %203 = vmatprep.subr.mxu0 0.0
    %204 = vmatpush1.xpose.msra.mxu0 0.0
    %205 = vmatprep.subr.mxu0 0.0
    %206 = vmatpush1.xpose.msra.mxu0 0.0
    %207 = vmatprep.subr.mxu0 0.0
    %208 = vmatpush1.xpose.msra.mxu0 0.0
    %209 = vmatprep.subr.mxu0 0.0
    %210 = vmatpush1.xpose.msra.mxu0 0.0
    %211 = vmatprep.subr.mxu0 0.0
    %212 = vmatpush1.xpose.msra.mxu0 0.0
    %213 = vmatprep.subr.mxu0 0.0
    %214 = vmatpush1.xpose.msra.mxu0 0.0
    %215 = vmatprep.subr.mxu0 0.0
    %216 = vmatpush1.xpose.msra.mxu0 0.0
    %217 = vmatprep.subr.mxu0 0.0
    %218 = vmatpush1.xpose.msra.mxu0 0.0
    %219 = vmatprep.subr.mxu0 0.0
    %220 = vmatpush1.xpose.msra.mxu0 0.0
    %221 = vmatprep.subr.mxu0 0.0
    %222 = vmatpush1.xpose.msra.mxu0 0.0
    %223 = vmatprep.subr.mxu0 0.0
    %224 = vmatpush1.xpose.msra.mxu0 0.0
    %225 = vmatprep.subr.mxu0 0.0
    %226 = vmatpush1.xpose.msra.mxu0 0.0
    %227 = vmatprep.subr.mxu0 0.0
    %228 = vmatpush1.xpose.msra.mxu0 0.0
    %229 = vmatprep.subr.mxu0 0.0
    %230 = vmatpush1.xpose.msra.mxu0 0.0
    %231 = vmatprep.subr.mxu0 0.0
    %232 = vmatpush1.xpose.msra.mxu0 0.0
    %233 = vmatprep.subr.mxu0 0.0
    %234 = vmatpush1.xpose.msra.mxu0 0.0
    %235 = vmatprep.subr.mxu0 0.0
    %236 = vmatpush1.xpose.msra.mxu0 0.0
    %237 = vmatprep.subr.mxu0 0.0
    %238 = vmatpush1.xpose.msra.mxu0 0.0
    %239 = vmatprep.mubr.f32.mxu0 0.0
    %240 = vmatmul.mubr.f32.gmra.mrb[0].mxu0 %v158
    %v241 = vpop.f32.mrb[0].mxu0
    %v242 = vadd.f32 0.0, %v241
    %v243 = vpop.f32.mrb[0].mxu0
    %244 = vmatprep.mubr.f32.mxu0 0.0
    %245 = vmatmul.mubr.f32.gmra.mrb[0].mxu0 %v161
    %v246 = vpop.f32.mrb[0].mxu0
    %v247 = vadd.f32 0.0, %v246
    %v248 = vpop.f32.mrb[0].mxu0
    %249 = vmatprep.mubr.f32.mxu0 0.0
    %250 = vmatmul.mubr.f32.gmra.mrb[0].mxu0 %v164
    %v251 = vpop.f32.mrb[0].mxu0
    %v252 = vadd.f32 0.0, %v251
    %v253 = vpop.f32.mrb[0].mxu0
    %254 = vmatprep.mubr.f32.mxu0 0.0
    %255 = vmatmul.mubr.f32.gmra.mrb[0].mxu0 %v167
    %v256 = vpop.f32.mrb[0].mxu0
    %v257 = vadd.f32 0.0, %v256
    %v258 = vpop.f32.mrb[0].mxu0
    %259 = vdwg.mxu0
    %v261 = vsel %vm156, %v144, 0
    %v264 = vsel %vm156, %v145, 0
    %v267 = vsel %vm156, %v146, 0
    %v270 = vsel %vm156, %v147, 0
    %272 = vmatprep.subr.mxu0 0.0
    %273 = vmatpush1.xpose.msra.mxu0 %v170
    %274 = vmatprep.subr.mxu0 0.0
    %275 = vmatpush1.xpose.msra.mxu0 %v173
    %276 = vmatprep.subr.mxu0 0.0
    %277 = vmatpush1.xpose.msra.mxu0 0.0
    %278 = vmatprep.subr.mxu0 0.0
    %279 = vmatpush1.xpose.msra.mxu0 0.0
    %280 = vmatprep.subr.mxu0 0.0
    %281 = vmatpush1.xpose.msra.mxu0 0.0
    %282 = vmatprep.subr.mxu0 0.0
    %283 = vmatpush1.xpose.msra.mxu0 0.0
    %284 = vmatprep.subr.mxu0 0.0
    %285 = vmatpush1.xpose.msra.mxu0 0.0
    %286 = vmatprep.subr.mxu0 0.0
    %287 = vmatpush1.xpose.msra.mxu0 0.0
    %288 = vmatprep.subr.mxu0 0.0
    %289 = vmatpush1.xpose.msra.mxu0 0.0
    %290 = vmatprep.subr.mxu0 0.0
    %291 = vmatpush1.xpose.msra.mxu0 0.0
    %292 = vmatprep.subr.mxu0 0.0
    %293 = vmatpush1.xpose.msra.mxu0 0.0
    %294 = vmatprep.subr.mxu0 0.0
    %295 = vmatpush1.xpose.msra.mxu0 0.0
    %296 = vmatprep.subr.mxu0 0.0
    %297 = vmatpush1.xpose.msra.mxu0 0.0
    %298 = vmatprep.subr.mxu0 0.0
    %299 = vmatpush1.xpose.msra.mxu0 0.0
    %300 = vmatprep.subr.mxu0 0.0
    %301 = vmatpush1.xpose.msra.mxu0 0.0
    %302 = vmatprep.subr.mxu0 0.0
    %303 = vmatpush1.xpose.msra.mxu0 0.0
    %304 = vmatprep.subr.mxu0 0.0
    %305 = vmatpush1.xpose.msra.mxu0 0.0
    %306 = vmatprep.subr.mxu0 0.0
    %307 = vmatpush1.xpose.msra.mxu0 0.0
    %308 = vmatprep.subr.mxu0 0.0
    %309 = vmatpush1.xpose.msra.mxu0 0.0
    %310 = vmatprep.subr.mxu0 0.0
    %311 = vmatpush1.xpose.msra.mxu0 0.0
    %312 = vmatprep.subr.mxu0 0.0
    %313 = vmatpush1.xpose.msra.mxu0 0.0
    %314 = vmatprep.subr.mxu0 0.0
    %315 = vmatpush1.xpose.msra.mxu0 0.0
    %316 = vmatprep.subr.mxu0 0.0
    %317 = vmatpush1.xpose.msra.mxu0 0.0
    %318 = vmatprep.subr.mxu0 0.0
    %319 = vmatpush1.xpose.msra.mxu0 0.0
    %320 = vmatprep.subr.mxu0 0.0
    %321 = vmatpush1.xpose.msra.mxu0 0.0
    %322 = vmatprep.subr.mxu0 0.0
    %323 = vmatpush1.xpose.msra.mxu0 0.0
    %324 = vmatprep.subr.mxu0 0.0
    %325 = vmatpush1.xpose.msra.mxu0 0.0
    %326 = vmatprep.subr.mxu0 0.0
    %327 = vmatpush1.xpose.msra.mxu0 0.0
    %328 = vmatprep.subr.mxu0 0.0
    %329 = vmatpush1.xpose.msra.mxu0 0.0
    %330 = vmatprep.subr.mxu0 0.0
    %331 = vmatpush1.xpose.msra.mxu0 0.0
    %332 = vmatprep.subr.mxu0 0.0
    %333 = vmatpush1.xpose.msra.mxu0 0.0
    %334 = vmatprep.subr.mxu0 0.0
    %335 = vmatpush1.xpose.msra.mxu0 0.0
    %336 = vmatprep.mubr.f32.mxu0 0.0
    %337 = vmatmul.mubr.f32.gmra.mrb[0].mxu0 %v261
    %v338 = vpop.f32.mrb[0].mxu0
    %v339 = vadd.f32 0.0, %v338
    %v340 = vpop.f32.mrb[0].mxu0
    %341 = vmatprep.mubr.f32.mxu0 0.0
    %342 = vmatmul.mubr.f32.gmra.mrb[0].mxu0 %v264
    %v343 = vpop.f32.mrb[0].mxu0
    %v344 = vadd.f32 0.0, %v343
    %v345 = vpop.f32.mrb[0].mxu0
    %346 = vmatprep.mubr.f32.mxu0 0.0
    %347 = vmatmul.mubr.f32.gmra.mrb[0].mxu0 %v267
    %v348 = vpop.f32.mrb[0].mxu0
    %v349 = vadd.f32 0.0, %v348
    %v350 = vpop.f32.mrb[0].mxu0
    %351 = vmatprep.mubr.f32.mxu0 0.0
    %352 = vmatmul.mubr.f32.gmra.mrb[0].mxu0 %v270
    %v353 = vpop.f32.mrb[0].mxu0
    %v354 = vadd.f32 0.0, %v353
    %v355 = vpop.f32.mrb[0].mxu0
    %356 = vdwg.mxu0
    %v358 = vsel %vm156, %v148, 0
    %v361 = vsel %vm156, %v149, 0
    %v364 = vsel %vm156, %v150, 0
    %v367 = vsel %vm156, %v151, 0
    %369 = vmatprep.subr.mxu0 0.0
    %370 = vmatpush1.xpose.msra.mxu0 %v170
    %371 = vmatprep.subr.mxu0 0.0
    %372 = vmatpush1.xpose.msra.mxu0 %v173
    %373 = vmatprep.subr.mxu0 0.0
    %374 = vmatpush1.xpose.msra.mxu0 0.0
    %375 = vmatprep.subr.mxu0 0.0
    %376 = vmatpush1.xpose.msra.mxu0 0.0
    %377 = vmatprep.subr.mxu0 0.0
    %378 = vmatpush1.xpose.msra.mxu0 0.0
    %379 = vmatprep.subr.mxu0 0.0
    %380 = vmatpush1.xpose.msra.mxu0 0.0
    %381 = vmatprep.subr.mxu0 0.0
    %382 = vmatpush1.xpose.msra.mxu0 0.0
    %383 = vmatprep.subr.mxu0 0.0
    %384 = vmatpush1.xpose.msra.mxu0 0.0
    %385 = vmatprep.subr.mxu0 0.0
    %386 = vmatpush1.xpose.msra.mxu0 0.0
    %387 = vmatprep.subr.mxu0 0.0
    %388 = vmatpush1.xpose.msra.mxu0 0.0
    %389 = vmatprep.subr.mxu0 0.0
    %390 = vmatpush1.xpose.msra.mxu0 0.0
    %391 = vmatprep.subr.mxu0 0.0
    %392 = vmatpush1.xpose.msra.mxu0 0.0
    %393 = vmatprep.subr.mxu0 0.0
    %394 = vmatpush1.xpose.msra.mxu0 0.0
    %395 = vmatprep.subr.mxu0 0.0
    %396 = vmatpush1.xpose.msra.mxu0 0.0
    %397 = vmatprep.subr.mxu0 0.0
    %398 = vmatpush1.xpose.msra.mxu0 0.0
    %399 = vmatprep.subr.mxu0 0.0
    %400 = vmatpush1.xpose.msra.mxu0 0.0
    %401 = vmatprep.subr.mxu0 0.0
    %402 = vmatpush1.xpose.msra.mxu0 0.0
    %403 = vmatprep.subr.mxu0 0.0
    %404 = vmatpush1.xpose.msra.mxu0 0.0
    %405 = vmatprep.subr.mxu0 0.0
    %406 = vmatpush1.xpose.msra.mxu0 0.0
    %407 = vmatprep.subr.mxu0 0.0
    %408 = vmatpush1.xpose.msra.mxu0 0.0
    %409 = vmatprep.subr.mxu0 0.0
    %410 = vmatpush1.xpose.msra.mxu0 0.0
    %411 = vmatprep.subr.mxu0 0.0
    %412 = vmatpush1.xpose.msra.mxu0 0.0
    %413 = vmatprep.subr.mxu0 0.0
    %414 = vmatpush1.xpose.msra.mxu0 0.0
    %415 = vmatprep.subr.mxu0 0.0
    %416 = vmatpush1.xpose.msra.mxu0 0.0
    %417 = vmatprep.subr.mxu0 0.0
    %418 = vmatpush1.xpose.msra.mxu0 0.0
    %419 = vmatprep.subr.mxu0 0.0
    %420 = vmatpush1.xpose.msra.mxu0 0.0
    %421 = vmatprep.subr.mxu0 0.0
    %422 = vmatpush1.xpose.msra.mxu0 0.0
    %423 = vmatprep.subr.mxu0 0.0
    %424 = vmatpush1.xpose.msra.mxu0 0.0
    %425 = vmatprep.subr.mxu0 0.0
    %426 = vmatpush1.xpose.msra.mxu0 0.0
    %427 = vmatprep.subr.mxu0 0.0
    %428 = vmatpush1.xpose.msra.mxu0 0.0
    %429 = vmatprep.subr.mxu0 0.0
    %430 = vmatpush1.xpose.msra.mxu0 0.0
    %431 = vmatprep.subr.mxu0 0.0
    %432 = vmatpush1.xpose.msra.mxu0 0.0
    %433 = vmatprep.mubr.f32.mxu0 0.0
    %434 = vmatmul.mubr.f32.gmra.mrb[0].mxu0 %v358
    %v435 = vpop.f32.mrb[0].mxu0
    %v436 = vadd.f32 0.0, %v435
    %v437 = vpop.f32.mrb[0].mxu0
    %438 = vmatprep.mubr.f32.mxu0 0.0
    %439 = vmatmul.mubr.f32.gmra.mrb[0].mxu0 %v361
    %v440 = vpop.f32.mrb[0].mxu0
    %v441 = vadd.f32 0.0, %v440
    %v442 = vpop.f32.mrb[0].mxu0
    %443 = vmatprep.mubr.f32.mxu0 0.0
    %444 = vmatmul.mubr.f32.gmra.mrb[0].mxu0 %v364
    %v445 = vpop.f32.mrb[0].mxu0
    %v446 = vadd.f32 0.0, %v445
    %v447 = vpop.f32.mrb[0].mxu0
    %448 = vmatprep.mubr.f32.mxu0 0.0
    %449 = vmatmul.mubr.f32.gmra.mrb[0].mxu0 %v367
    %v450 = vpop.f32.mrb[0].mxu0
    %v451 = vadd.f32 0.0, %v450
    %v452 = vpop.f32.mrb[0].mxu0
    %453 = vdwg.mxu0
    %v455 = vsel %vm156, %v152, 0
    %v458 = vsel %vm156, %v153, 0
    %v461 = vsel %vm156, %v154, 0
    %v464 = vsel %vm156, %v155, 0
    %466 = vmatprep.subr.mxu0 0.0
    %467 = vmatpush1.xpose.msra.mxu0 %v170
    %468 = vmatprep.subr.mxu0 0.0
    %469 = vmatpush1.xpose.msra.mxu0 %v173
    %470 = vmatprep.subr.mxu0 0.0
    %471 = vmatpush1.xpose.msra.mxu0 0.0
    %472 = vmatprep.subr.mxu0 0.0
    %473 = vmatpush1.xpose.msra.mxu0 0.0
    %474 = vmatprep.subr.mxu0 0.0
    %475 = vmatpush1.xpose.msra.mxu0 0.0
    %476 = vmatprep.subr.mxu0 0.0
    %477 = vmatpush1.xpose.msra.mxu0 0.0
    %478 = vmatprep.subr.mxu0 0.0
    %479 = vmatpush1.xpose.msra.mxu0 0.0
    %480 = vmatprep.subr.mxu0 0.0
    %481 = vmatpush1.xpose.msra.mxu0 0.0
    %482 = vmatprep.subr.mxu0 0.0
    %483 = vmatpush1.xpose.msra.mxu0 0.0
    %484 = vmatprep.subr.mxu0 0.0
    %485 = vmatpush1.xpose.msra.mxu0 0.0
    %486 = vmatprep.subr.mxu0 0.0
    %487 = vmatpush1.xpose.msra.mxu0 0.0
    %488 = vmatprep.subr.mxu0 0.0
    %489 = vmatpush1.xpose.msra.mxu0 0.0
    %490 = vmatprep.subr.mxu0 0.0
    %491 = vmatpush1.xpose.msra.mxu0 0.0
    %492 = vmatprep.subr.mxu0 0.0
    %493 = vmatpush1.xpose.msra.mxu0 0.0
    %494 = vmatprep.subr.mxu0 0.0
    %495 = vmatpush1.xpose.msra.mxu0 0.0
    %496 = vmatprep.subr.mxu0 0.0
    %497 = vmatpush1.xpose.msra.mxu0 0.0
    %498 = vmatprep.subr.mxu0 0.0
    %499 = vmatpush1.xpose.msra.mxu0 0.0
    %500 = vmatprep.subr.mxu0 0.0
    %501 = vmatpush1.xpose.msra.mxu0 0.0
    %502 = vmatprep.subr.mxu0 0.0
    %503 = vmatpush1.xpose.msra.mxu0 0.0
    %504 = vmatprep.subr.mxu0 0.0
    %505 = vmatpush1.xpose.msra.mxu0 0.0
    %506 = vmatprep.subr.mxu0 0.0
    %507 = vmatpush1.xpose.msra.mxu0 0.0
    %508 = vmatprep.subr.mxu0 0.0
    %509 = vmatpush1.xpose.msra.mxu0 0.0
    %510 = vmatprep.subr.mxu0 0.0
    %511 = vmatpush1.xpose.msra.mxu0 0.0
    %512 = vmatprep.subr.mxu0 0.0
    %513 = vmatpush1.xpose.msra.mxu0 0.0
    %514 = vmatprep.subr.mxu0 0.0
    %515 = vmatpush1.xpose.msra.mxu0 0.0
    %516 = vmatprep.subr.mxu0 0.0
    %517 = vmatpush1.xpose.msra.mxu0 0.0
    %518 = vmatprep.subr.mxu0 0.0
    %519 = vmatpush1.xpose.msra.mxu0 0.0
    %520 = vmatprep.subr.mxu0 0.0
    %521 = vmatpush1.xpose.msra.mxu0 0.0
    %522 = vmatprep.subr.mxu0 0.0
    %523 = vmatpush1.xpose.msra.mxu0 0.0
    %524 = vmatprep.subr.mxu0 0.0
    %525 = vmatpush1.xpose.msra.mxu0 0.0
    %526 = vmatprep.subr.mxu0 0.0
    %527 = vmatpush1.xpose.msra.mxu0 0.0
    %528 = vmatprep.subr.mxu0 0.0
    %529 = vmatpush1.xpose.msra.mxu0 0.0
    %530 = vmatprep.mubr.f32.mxu0 0.0
    %531 = vmatmul.mubr.f32.gmra.mrb[0].mxu0 %v455
    %v532 = vpop.f32.mrb[0].mxu0
    %v533 = vadd.f32 0.0, %v532
    %v534 = vpop.f32.mrb[0].mxu0
    %535 = vmatprep.mubr.f32.mxu0 0.0
    %536 = vmatmul.mubr.f32.gmra.mrb[0].mxu0 %v458
    %v537 = vpop.f32.mrb[0].mxu0
    %v538 = vadd.f32 0.0, %v537
    %v539 = vpop.f32.mrb[0].mxu0
    %540 = vmatprep.mubr.f32.mxu0 0.0
    %541 = vmatmul.mubr.f32.gmra.mrb[0].mxu0 %v461
    %v542 = vpop.f32.mrb[0].mxu0
    %v543 = vadd.f32 0.0, %v542
    %v544 = vpop.f32.mrb[0].mxu0
    %545 = vmatprep.mubr.f32.mxu0 0.0
    %546 = vmatmul.mubr.f32.gmra.mrb[0].mxu0 %v464
    %v547 = vpop.f32.mrb[0].mxu0
    %v548 = vadd.f32 0.0, %v547
    %v549 = vpop.f32.mrb[0].mxu0
    %550 = vdwg.mxu0
    %v551 = vld [vmem:[#allocation10] sm:$0xf]
    %v552 = vld [vmem:[#allocation10 + $0x4] sm:$0xf]
    %v553 = vld [vmem:[#allocation10 + $0x8] sm:$0xf]
    %v554 = vld [vmem:[#allocation10 + $0xc] sm:$0xf]
    %v555 = vld [vmem:[#allocation10 + $0x10] sm:$0xf]
    %v556 = vld [vmem:[#allocation10 + $0x14] sm:$0xf]
    %v557 = vld [vmem:[#allocation10 + $0x18] sm:$0xf]
    %v558 = vld [vmem:[#allocation10 + $0x1c] sm:$0xf]
    %v559 = vunpack.c.l.bf16 %v551
    %v560 = vunpack.c.l.bf16 %v552
    %v561 = vunpack.c.l.bf16 %v553
    %v562 = vunpack.c.l.bf16 %v554
    %v563 = vunpack.c.l.bf16 %v555
    %v564 = vunpack.c.l.bf16 %v556
    %v565 = vunpack.c.l.bf16 %v557
    %v566 = vunpack.c.l.bf16 %v558
    %v568 = vsel %vm156, %v136, 0
    %v571 = vsel %vm156, %v137, 0
    %573 = vmatprep.subr.mxu0 0.0
    %574 = vmatpush1.msra.mxu0 %v242
    %575 = vmatprep.subr.mxu0 0.0
    %576 = vmatpush1.msra.mxu0 %v247
    %577 = vmatprep.subr.mxu0 0.0
    %578 = vmatpush1.msra.mxu0 %v252
    %579 = vmatprep.subr.mxu0 0.0
    %580 = vmatpush1.msra.mxu0 %v257
    %581 = vmatprep.subr.mxu0 0.0
    %582 = vmatpush1.msra.mxu0 0.0
    %583 = vmatprep.subr.mxu0 0.0
    %584 = vmatpush1.msra.mxu0 0.0
    %585 = vmatprep.subr.mxu0 0.0
    %586 = vmatpush1.msra.mxu0 0.0
    %587 = vmatprep.subr.mxu0 0.0
    %588 = vmatpush1.msra.mxu0 0.0
    %589 = vmatprep.subr.mxu0 0.0
    %590 = vmatpush1.msra.mxu0 0.0
    %591 = vmatprep.subr.mxu0 0.0
    %592 = vmatpush1.msra.mxu0 0.0
    %593 = vmatprep.subr.mxu0 0.0
    %594 = vmatpush1.msra.mxu0 0.0
    %595 = vmatprep.subr.mxu0 0.0
    %596 = vmatpush1.msra.mxu0 0.0
    %597 = vmatprep.subr.mxu0 0.0
    %598 = vmatpush1.msra.mxu0 0.0
    %599 = vmatprep.subr.mxu0 0.0
    %600 = vmatpush1.msra.mxu0 0.0
    %601 = vmatprep.subr.mxu0 0.0
    %602 = vmatpush1.msra.mxu0 0.0
    %603 = vmatprep.subr.mxu0 0.0
    %604 = vmatpush1.msra.mxu0 0.0
    %605 = vmatprep.subr.mxu0 0.0
    %606 = vmatpush1.msra.mxu0 0.0
    %607 = vmatprep.subr.mxu0 0.0
    %608 = vmatpush1.msra.mxu0 0.0
    %609 = vmatprep.subr.mxu0 0.0
    %610 = vmatpush1.msra.mxu0 0.0
    %611 = vmatprep.subr.mxu0 0.0
    %612 = vmatpush1.msra.mxu0 0.0
    %613 = vmatprep.subr.mxu0 0.0
    %614 = vmatpush1.msra.mxu0 0.0
    %615 = vmatprep.subr.mxu0 0.0
    %616 = vmatpush1.msra.mxu0 0.0
    %617 = vmatprep.subr.mxu0 0.0
    %618 = vmatpush1.msra.mxu0 0.0
    %619 = vmatprep.subr.mxu0 0.0
    %620 = vmatpush1.msra.mxu0 0.0
    %621 = vmatprep.subr.mxu0 0.0
    %622 = vmatpush1.msra.mxu0 0.0
    %623 = vmatprep.subr.mxu0 0.0
    %624 = vmatpush1.msra.mxu0 0.0
    %625 = vmatprep.subr.mxu0 0.0
    %626 = vmatpush1.msra.mxu0 0.0
    %627 = vmatprep.subr.mxu0 0.0
    %628 = vmatpush1.msra.mxu0 0.0
    %629 = vmatprep.subr.mxu0 0.0
    %630 = vmatpush1.msra.mxu0 0.0
    %631 = vmatprep.subr.mxu0 0.0
    %632 = vmatpush1.msra.mxu0 0.0
    %633 = vmatprep.subr.mxu0 0.0
    %634 = vmatpush1.msra.mxu0 0.0
    %635 = vmatprep.subr.mxu0 0.0
    %636 = vmatpush1.msra.mxu0 0.0
    %637 = vmatprep.mubr.f32.mxu0 0.0
    %638 = vmatmul.mubr.f32.gmra.mrb[0].mxu0 %v568
    %v639 = vpop.f32.mrb[0].mxu0
    %v640 = vadd.f32 %v559, %v639
    %v641 = vpop.f32.mrb[0].mxu0
    %642 = vmatprep.mubr.f32.mxu0 0.0
    %643 = vmatmul.mubr.f32.gmra.mrb[0].mxu0 %v571
    %v644 = vpop.f32.mrb[0].mxu0
    %v645 = vadd.f32 %v560, %v644
    %v646 = vpop.f32.mrb[0].mxu0
    %647 = vdwg.mxu0
    %648 = vmatprep.subr.mxu0 0.0
    %649 = vmatpush1.msra.mxu0 %v339
    %650 = vmatprep.subr.mxu0 0.0
    %651 = vmatpush1.msra.mxu0 %v344
    %652 = vmatprep.subr.mxu0 0.0
    %653 = vmatpush1.msra.mxu0 %v349
    %654 = vmatprep.subr.mxu0 0.0
    %655 = vmatpush1.msra.mxu0 %v354
    %656 = vmatprep.subr.mxu0 0.0
    %657 = vmatpush1.msra.mxu0 0.0
    %658 = vmatprep.subr.mxu0 0.0
    %659 = vmatpush1.msra.mxu0 0.0
    %660 = vmatprep.subr.mxu0 0.0
    %661 = vmatpush1.msra.mxu0 0.0
    %662 = vmatprep.subr.mxu0 0.0
    %663 = vmatpush1.msra.mxu0 0.0
    %664 = vmatprep.subr.mxu0 0.0
    %665 = vmatpush1.msra.mxu0 0.0
    %666 = vmatprep.subr.mxu0 0.0
    %667 = vmatpush1.msra.mxu0 0.0
    %668 = vmatprep.subr.mxu0 0.0
    %669 = vmatpush1.msra.mxu0 0.0
    %670 = vmatprep.subr.mxu0 0.0
    %671 = vmatpush1.msra.mxu0 0.0
    %672 = vmatprep.subr.mxu0 0.0
    %673 = vmatpush1.msra.mxu0 0.0
    %674 = vmatprep.subr.mxu0 0.0
    %675 = vmatpush1.msra.mxu0 0.0
    %676 = vmatprep.subr.mxu0 0.0
    %677 = vmatpush1.msra.mxu0 0.0
    %678 = vmatprep.subr.mxu0 0.0
    %679 = vmatpush1.msra.mxu0 0.0
    %680 = vmatprep.subr.mxu0 0.0
    %681 = vmatpush1.msra.mxu0 0.0
    %682 = vmatprep.subr.mxu0 0.0
    %683 = vmatpush1.msra.mxu0 0.0
    %684 = vmatprep.subr.mxu0 0.0
    %685 = vmatpush1.msra.mxu0 0.0
    %686 = vmatprep.subr.mxu0 0.0
    %687 = vmatpush1.msra.mxu0 0.0
    %688 = vmatprep.subr.mxu0 0.0
    %689 = vmatpush1.msra.mxu0 0.0
    %690 = vmatprep.subr.mxu0 0.0
    %691 = vmatpush1.msra.mxu0 0.0
    %692 = vmatprep.subr.mxu0 0.0
    %693 = vmatpush1.msra.mxu0 0.0
    %694 = vmatprep.subr.mxu0 0.0
    %695 = vmatpush1.msra.mxu0 0.0
    %696 = vmatprep.subr.mxu0 0.0
    %697 = vmatpush1.msra.mxu0 0.0
    %698 = vmatprep.subr.mxu0 0.0
    %699 = vmatpush1.msra.mxu0 0.0
    %700 = vmatprep.subr.mxu0 0.0
    %701 = vmatpush1.msra.mxu0 0.0
    %702 = vmatprep.subr.mxu0 0.0
    %703 = vmatpush1.msra.mxu0 0.0
    %704 = vmatprep.subr.mxu0 0.0
    %705 = vmatpush1.msra.mxu0 0.0
    %706 = vmatprep.subr.mxu0 0.0
    %707 = vmatpush1.msra.mxu0 0.0
    %708 = vmatprep.subr.mxu0 0.0
    %709 = vmatpush1.msra.mxu0 0.0
    %710 = vmatprep.subr.mxu0 0.0
    %711 = vmatpush1.msra.mxu0 0.0
    %712 = vmatprep.mubr.f32.mxu0 0.0
    %713 = vmatmul.mubr.f32.gmra.mrb[0].mxu0 %v568
    %v714 = vpop.f32.mrb[0].mxu0
    %v715 = vadd.f32 %v561, %v714
    %v716 = vpop.f32.mrb[0].mxu0
    %717 = vmatprep.mubr.f32.mxu0 0.0
    %718 = vmatmul.mubr.f32.gmra.mrb[0].mxu0 %v571
    %v719 = vpop.f32.mrb[0].mxu0
    %v720 = vadd.f32 %v562, %v719
    %v721 = vpop.f32.mrb[0].mxu0
    %722 = vdwg.mxu0
    %723 = vmatprep.subr.mxu0 0.0
    %724 = vmatpush1.msra.mxu0 %v436
    %725 = vmatprep.subr.mxu0 0.0
    %726 = vmatpush1.msra.mxu0 %v441
    %727 = vmatprep.subr.mxu0 0.0
    %728 = vmatpush1.msra.mxu0 %v446
    %729 = vmatprep.subr.mxu0 0.0
    %730 = vmatpush1.msra.mxu0 %v451
    %731 = vmatprep.subr.mxu0 0.0
    %732 = vmatpush1.msra.mxu0 0.0
    %733 = vmatprep.subr.mxu0 0.0
    %734 = vmatpush1.msra.mxu0 0.0
    %735 = vmatprep.subr.mxu0 0.0
    %736 = vmatpush1.msra.mxu0 0.0
    %737 = vmatprep.subr.mxu0 0.0
    %738 = vmatpush1.msra.mxu0 0.0
    %739 = vmatprep.subr.mxu0 0.0
    %740 = vmatpush1.msra.mxu0 0.0
    %741 = vmatprep.subr.mxu0 0.0
    %742 = vmatpush1.msra.mxu0 0.0
    %743 = vmatprep.subr.mxu0 0.0
    %744 = vmatpush1.msra.mxu0 0.0
    %745 = vmatprep.subr.mxu0 0.0
    %746 = vmatpush1.msra.mxu0 0.0
    %747 = vmatprep.subr.mxu0 0.0
    %748 = vmatpush1.msra.mxu0 0.0
    %749 = vmatprep.subr.mxu0 0.0
    %750 = vmatpush1.msra.mxu0 0.0
    %751 = vmatprep.subr.mxu0 0.0
    %752 = vmatpush1.msra.mxu0 0.0
    %753 = vmatprep.subr.mxu0 0.0
    %754 = vmatpush1.msra.mxu0 0.0
    %755 = vmatprep.subr.mxu0 0.0
    %756 = vmatpush1.msra.mxu0 0.0
    %757 = vmatprep.subr.mxu0 0.0
    %758 = vmatpush1.msra.mxu0 0.0
    %759 = vmatprep.subr.mxu0 0.0
    %760 = vmatpush1.msra.mxu0 0.0
    %761 = vmatprep.subr.mxu0 0.0
    %762 = vmatpush1.msra.mxu0 0.0
    %763 = vmatprep.subr.mxu0 0.0
    %764 = vmatpush1.msra.mxu0 0.0
    %765 = vmatprep.subr.mxu0 0.0
    %766 = vmatpush1.msra.mxu0 0.0
    %767 = vmatprep.subr.mxu0 0.0
    %768 = vmatpush1.msra.mxu0 0.0
    %769 = vmatprep.subr.mxu0 0.0
    %770 = vmatpush1.msra.mxu0 0.0
    %771 = vmatprep.subr.mxu0 0.0
    %772 = vmatpush1.msra.mxu0 0.0
    %773 = vmatprep.subr.mxu0 0.0
    %774 = vmatpush1.msra.mxu0 0.0
    %775 = vmatprep.subr.mxu0 0.0
    %776 = vmatpush1.msra.mxu0 0.0
    %777 = vmatprep.subr.mxu0 0.0
    %778 = vmatpush1.msra.mxu0 0.0
    %779 = vmatprep.subr.mxu0 0.0
    %780 = vmatpush1.msra.mxu0 0.0
    %781 = vmatprep.subr.mxu0 0.0
    %782 = vmatpush1.msra.mxu0 0.0
    %783 = vmatprep.subr.mxu0 0.0
    %784 = vmatpush1.msra.mxu0 0.0
    %785 = vmatprep.subr.mxu0 0.0
    %786 = vmatpush1.msra.mxu0 0.0
    %787 = vmatprep.mubr.f32.mxu0 0.0
    %788 = vmatmul.mubr.f32.gmra.mrb[0].mxu0 %v568
    %v789 = vpop.f32.mrb[0].mxu0
    %v790 = vadd.f32 %v563, %v789
    %v791 = vpop.f32.mrb[0].mxu0
    %792 = vmatprep.mubr.f32.mxu0 0.0
    %793 = vmatmul.mubr.f32.gmra.mrb[0].mxu0 %v571
    %v794 = vpop.f32.mrb[0].mxu0
    %v795 = vadd.f32 %v564, %v794
    %v796 = vpop.f32.mrb[0].mxu0
    %797 = vdwg.mxu0
    %798 = vmatprep.subr.mxu0 0.0
    %799 = vmatpush1.msra.mxu0 %v533
    %800 = vmatprep.subr.mxu0 0.0
    %801 = vmatpush1.msra.mxu0 %v538
    %802 = vmatprep.subr.mxu0 0.0
    %803 = vmatpush1.msra.mxu0 %v543
    %804 = vmatprep.subr.mxu0 0.0
    %805 = vmatpush1.msra.mxu0 %v548
    %806 = vmatprep.subr.mxu0 0.0
    %807 = vmatpush1.msra.mxu0 0.0
    %808 = vmatprep.subr.mxu0 0.0
    %809 = vmatpush1.msra.mxu0 0.0
    %810 = vmatprep.subr.mxu0 0.0
    %811 = vmatpush1.msra.mxu0 0.0
    %812 = vmatprep.subr.mxu0 0.0
    %813 = vmatpush1.msra.mxu0 0.0
    %814 = vmatprep.subr.mxu0 0.0
    %815 = vmatpush1.msra.mxu0 0.0
    %816 = vmatprep.subr.mxu0 0.0
    %817 = vmatpush1.msra.mxu0 0.0
    %818 = vmatprep.subr.mxu0 0.0
    %819 = vmatpush1.msra.mxu0 0.0
    %820 = vmatprep.subr.mxu0 0.0
    %821 = vmatpush1.msra.mxu0 0.0
    %822 = vmatprep.subr.mxu0 0.0
    %823 = vmatpush1.msra.mxu0 0.0
    %824 = vmatprep.subr.mxu0 0.0
    %825 = vmatpush1.msra.mxu0 0.0
    %826 = vmatprep.subr.mxu0 0.0
    %827 = vmatpush1.msra.mxu0 0.0
    %828 = vmatprep.subr.mxu0 0.0
    %829 = vmatpush1.msra.mxu0 0.0
    %830 = vmatprep.subr.mxu0 0.0
    %831 = vmatpush1.msra.mxu0 0.0
    %832 = vmatprep.subr.mxu0 0.0
    %833 = vmatpush1.msra.mxu0 0.0
    %834 = vmatprep.subr.mxu0 0.0
    %835 = vmatpush1.msra.mxu0 0.0
    %836 = vmatprep.subr.mxu0 0.0
    %837 = vmatpush1.msra.mxu0 0.0
    %838 = vmatprep.subr.mxu0 0.0
    %839 = vmatpush1.msra.mxu0 0.0
    %840 = vmatprep.subr.mxu0 0.0
    %841 = vmatpush1.msra.mxu0 0.0
    %842 = vmatprep.subr.mxu0 0.0
    %843 = vmatpush1.msra.mxu0 0.0
    %844 = vmatprep.subr.mxu0 0.0
    %845 = vmatpush1.msra.mxu0 0.0
    %846 = vmatprep.subr.mxu0 0.0
    %847 = vmatpush1.msra.mxu0 0.0
    %848 = vmatprep.subr.mxu0 0.0
    %849 = vmatpush1.msra.mxu0 0.0
    %850 = vmatprep.subr.mxu0 0.0
    %851 = vmatpush1.msra.mxu0 0.0
    %852 = vmatprep.subr.mxu0 0.0
    %853 = vmatpush1.msra.mxu0 0.0
    %854 = vmatprep.subr.mxu0 0.0
    %855 = vmatpush1.msra.mxu0 0.0
    %856 = vmatprep.subr.mxu0 0.0
    %857 = vmatpush1.msra.mxu0 0.0
    %858 = vmatprep.subr.mxu0 0.0
    %859 = vmatpush1.msra.mxu0 0.0
    %860 = vmatprep.subr.mxu0 0.0
    %861 = vmatpush1.msra.mxu0 0.0
    %862 = vmatprep.mubr.f32.mxu0 0.0
    %863 = vmatmul.mubr.f32.gmra.mrb[0].mxu0 %v568
    %v864 = vpop.f32.mrb[0].mxu0
    %v865 = vadd.f32 %v565, %v864
    %v866 = vpop.f32.mrb[0].mxu0
    %867 = vmatprep.mubr.f32.mxu0 0.0
    %868 = vmatmul.mubr.f32.gmra.mrb[0].mxu0 %v571
    %v869 = vpop.f32.mrb[0].mxu0
    %v870 = vadd.f32 %v566, %v869
    %v871 = vpop.f32.mrb[0].mxu0
    %872 = vdwg.mxu0
    %v873 = vld [vmem:[#allocation2] sm:$0xff]
    %v874 = vld [vmem:[#allocation2 + $0x8] sm:$0xff]
    %v875 = vld [vmem:[#allocation2 + $0x10] sm:$0xff]
    %v876 = vld [vmem:[#allocation2 + $0x18] sm:$0xff]
    %v877 = vld [vmem:[#allocation2 + $0x20] sm:$0xff]
    %v878 = vld [vmem:[#allocation2 + $0x28] sm:$0xff]
    %v879 = vld [vmem:[#allocation2 + $0x30] sm:$0xff]
    %v880 = vld [vmem:[#allocation2 + $0x38] sm:$0xff]
    %vm881 = vcmask 130048
    %v882 = vsel %vm881, %v640, -inf
    %883 = vmax.xlane.f32.xlu0 %v882
    %v884 = vpop.xlane.xlu0 %883
    %v885 = vsel %vm881, %v645, -inf
    %886 = vmax.xlane.f32.xlu0 %v885
    %v887 = vpop.xlane.xlu0 %886
    %v888 = vsel %vm881, %v715, -inf
    %889 = vmax.xlane.f32.xlu0 %v888
    %v890 = vpop.xlane.xlu0 %889
    %v891 = vsel %vm881, %v720, -inf
    %892 = vmax.xlane.f32.xlu0 %v891
    %v893 = vpop.xlane.xlu0 %892
    %v894 = vsel %vm881, %v790, -inf
    %895 = vmax.xlane.f32.xlu0 %v894
    %v896 = vpop.xlane.xlu0 %895
    %v897 = vsel %vm881, %v795, -inf
    %898 = vmax.xlane.f32.xlu0 %v897
    %v899 = vpop.xlane.xlu0 %898
    %v900 = vsel %vm881, %v865, -inf
    %901 = vmax.xlane.f32.xlu0 %v900
    %v902 = vpop.xlane.xlu0 %901
    %v903 = vsel %vm881, %v870, -inf
    %904 = vmax.xlane.f32.xlu0 %v903
    %v905 = vpop.xlane.xlu0 %904
    %v906 = vmax.f32 %v873, %v884
    %v907 = vmax.f32 %v874, %v887
    %v908 = vmax.f32 %v875, %v890
    %v909 = vmax.f32 %v876, %v893
    %v910 = vmax.f32 %v877, %v896
    %v911 = vmax.f32 %v878, %v899
    %v912 = vmax.f32 %v879, %v902
    %v913 = vmax.f32 %v880, %v905
    %v914 = vsub.f32 %v873, %v906
    %v915 = vsub.f32 %v874, %v907
    %v916 = vsub.f32 %v875, %v908
    %v917 = vsub.f32 %v876, %v909
    %v918 = vsub.f32 %v877, %v910
    %v919 = vsub.f32 %v878, %v911
    %v920 = vsub.f32 %v879, %v912
    %v921 = vsub.f32 %v880, %v913
    %v922 = vmul.f32 %v914, 1.442695
    %v923 = vpow.pop %v922
    %v924 = vmul.f32 %v915, 1.442695
    %v925 = vpow.pop %v924
    %v926 = vmul.f32 %v916, 1.442695
    %v927 = vpow.pop %v926
    %v928 = vmul.f32 %v917, 1.442695
    %v929 = vpow.pop %v928
    %v930 = vmul.f32 %v918, 1.442695
    %v931 = vpow.pop %v930
    %v932 = vmul.f32 %v919, 1.442695
    %v933 = vpow.pop %v932
    %v934 = vmul.f32 %v920, 1.442695
    %v935 = vpow.pop %v934
    %v936 = vmul.f32 %v921, 1.442695
    %v937 = vpow.pop %v936
    %939 = vset.pattern.permute.xlu0 0
    %940 = vperm.xlu0 %939, %v906
    %v941 = vpop.permute.xlu0 %940
    %944 = vset.pattern.permute.xlu0 0
    %945 = vperm.xlu0 %944, %v907
    %v946 = vpop.permute.xlu0 %945
    %949 = vset.pattern.permute.xlu0 0
    %950 = vperm.xlu0 %949, %v908
    %v951 = vpop.permute.xlu0 %950
    %954 = vset.pattern.permute.xlu0 0
    %955 = vperm.xlu0 %954, %v909
    %v956 = vpop.permute.xlu0 %955
    %959 = vset.pattern.permute.xlu0 0
    %960 = vperm.xlu0 %959, %v910
    %v961 = vpop.permute.xlu0 %960
    %964 = vset.pattern.permute.xlu0 0
    %965 = vperm.xlu0 %964, %v911
    %v966 = vpop.permute.xlu0 %965
    %969 = vset.pattern.permute.xlu0 0
    %970 = vperm.xlu0 %969, %v912
    %v971 = vpop.permute.xlu0 %970
    %974 = vset.pattern.permute.xlu0 0
    %975 = vperm.xlu0 %974, %v913
    %v976 = vpop.permute.xlu0 %975
    %v978 = vsub.f32 %v640, %v941
    %v979 = vsub.f32 %v645, %v946
    %v980 = vsub.f32 %v715, %v951
    %v981 = vsub.f32 %v720, %v956
    %v982 = vsub.f32 %v790, %v961
    %v983 = vsub.f32 %v795, %v966
    %v984 = vsub.f32 %v865, %v971
    %v985 = vsub.f32 %v870, %v976
    %v986 = vmul.f32 %v978, 1.442695
    %v987 = vpow.pop %v986
    %v988 = vmul.f32 %v979, 1.442695
    %v989 = vpow.pop %v988
    %v990 = vmul.f32 %v980, 1.442695
    %v991 = vpow.pop %v990
    %v992 = vmul.f32 %v981, 1.442695
    %v993 = vpow.pop %v992
    %v994 = vmul.f32 %v982, 1.442695
    %v995 = vpow.pop %v994
    %v996 = vmul.f32 %v983, 1.442695
    %v997 = vpow.pop %v996
    %v998 = vmul.f32 %v984, 1.442695
    %v999 = vpow.pop %v998
    %v1000 = vmul.f32 %v985, 1.442695
    %v1001 = vpow.pop %v1000
    %v1002 = vld [vmem:[#allocation3] sm:$0xff]
    %v1003 = vld [vmem:[#allocation3 + $0x8] sm:$0xff]
    %v1004 = vld [vmem:[#allocation3 + $0x10] sm:$0xff]
    %v1005 = vld [vmem:[#allocation3 + $0x18] sm:$0xff]
    %v1006 = vld [vmem:[#allocation3 + $0x20] sm:$0xff]
    %v1007 = vld [vmem:[#allocation3 + $0x28] sm:$0xff]
    %v1008 = vld [vmem:[#allocation3 + $0x30] sm:$0xff]
    %v1009 = vld [vmem:[#allocation3 + $0x38] sm:$0xff]
    %v1010 = vmul.f32 %v923, %v1002
    %v1011 = vmul.f32 %v925, %v1003
    %v1012 = vmul.f32 %v927, %v1004
    %v1013 = vmul.f32 %v929, %v1005
    %v1014 = vmul.f32 %v931, %v1006
    %v1015 = vmul.f32 %v933, %v1007
    %v1016 = vmul.f32 %v935, %v1008
    %v1017 = vmul.f32 %v937, %v1009
    %v1018 = vsel %vm881, %v987, 0.0
    %1019 = vadd.xlane.f32.xlu0 %v1018
    %v1020 = vpop.xlane.xlu0 %1019
    %v1021 = vsel %vm881, %v989, 0.0
    %1022 = vadd.xlane.f32.xlu0 %v1021
    %v1023 = vpop.xlane.xlu0 %1022
    %v1024 = vsel %vm881, %v991, 0.0
    %1025 = vadd.xlane.f32.xlu0 %v1024
    %v1026 = vpop.xlane.xlu0 %1025
    %v1027 = vsel %vm881, %v993, 0.0
    %1028 = vadd.xlane.f32.xlu0 %v1027
    %v1029 = vpop.xlane.xlu0 %1028
    %v1030 = vsel %vm881, %v995, 0.0
    %1031 = vadd.xlane.f32.xlu0 %v1030
    %v1032 = vpop.xlane.xlu0 %1031
    %v1033 = vsel %vm881, %v997, 0.0
    %1034 = vadd.xlane.f32.xlu0 %v1033
    %v1035 = vpop.xlane.xlu0 %1034
    %v1036 = vsel %vm881, %v999, 0.0
    %1037 = vadd.xlane.f32.xlu0 %v1036
    %v1038 = vpop.xlane.xlu0 %1037
    %v1039 = vsel %vm881, %v1001, 0.0
    %1040 = vadd.xlane.f32.xlu0 %v1039
    %v1041 = vpop.xlane.xlu0 %1040
    %v1042 = vadd.f32 %v1010, %v1020
    %v1043 = vadd.f32 %v1011, %v1023
    %v1044 = vadd.f32 %v1012, %v1026
    %v1045 = vadd.f32 %v1013, %v1029
    %v1046 = vadd.f32 %v1014, %v1032
    %v1047 = vadd.f32 %v1015, %v1035
    %v1048 = vadd.f32 %v1016, %v1038
    %v1049 = vadd.f32 %v1017, %v1041
    %vm1050 = vcmask 7168
    %1051 = vst.msk [vmem:[#allocation3] sm:$0xff] %vm1050, %v1042
    %1052 = vst.msk [vmem:[#allocation3 + $0x8] sm:$0xff] %vm1050, %v1043
    %1053 = vst.msk [vmem:[#allocation3 + $0x10] sm:$0xff] %vm1050, %v1044
    %1054 = vst.msk [vmem:[#allocation3 + $0x18] sm:$0xff] %vm1050, %v1045
    %1055 = vst.msk [vmem:[#allocation3 + $0x20] sm:$0xff] %vm1050, %v1046
    %1056 = vst.msk [vmem:[#allocation3 + $0x28] sm:$0xff] %vm1050, %v1047
    %1057 = vst.msk [vmem:[#allocation3 + $0x30] sm:$0xff] %vm1050, %v1048
    %1058 = vst.msk [vmem:[#allocation3 + $0x38] sm:$0xff] %vm1050, %v1049
    %v1059 = vld [vmem:[#allocation13] sm:$0xff]
    %v1060 = vld [vmem:[#allocation13 + $0x8] sm:$0xff]
    %v1061 = vld [vmem:[#allocation13 + $0x10] sm:$0xff]
    %v1062 = vld [vmem:[#allocation13 + $0x18] sm:$0xff]
    %v1063 = vld [vmem:[#allocation13 + $0x20] sm:$0xff]
    %v1064 = vld [vmem:[#allocation13 + $0x28] sm:$0xff]
    %v1065 = vld [vmem:[#allocation13 + $0x30] sm:$0xff]
    %v1066 = vld [vmem:[#allocation13 + $0x38] sm:$0xff]
    %v1067 = vld [vmem:[#allocation13 + $0x40] sm:$0xff]
    %v1068 = vld [vmem:[#allocation13 + $0x48] sm:$0xff]
    %v1069 = vld [vmem:[#allocation13 + $0x50] sm:$0xff]
    %v1070 = vld [vmem:[#allocation13 + $0x58] sm:$0xff]
    %v1071 = vld [vmem:[#allocation13 + $0x60] sm:$0xff]
    %v1072 = vld [vmem:[#allocation13 + $0x68] sm:$0xff]
    %v1073 = vld [vmem:[#allocation13 + $0x70] sm:$0xff]
    %v1074 = vld [vmem:[#allocation13 + $0x78] sm:$0xff]
    %1075 = vmatprep.subr.mxu0 0.0
    %1076 = vmatpush1.msra.mxu0 %v1059
    %1077 = vmatprep.subr.mxu0 0.0
    %1078 = vmatpush1.msra.mxu0 %v1060
    %1079 = vmatprep.subr.mxu0 0.0
    %1080 = vmatpush1.msra.mxu0 %v1061
    %1081 = vmatprep.subr.mxu0 0.0
    %1082 = vmatpush1.msra.mxu0 %v1062
    %1083 = vmatprep.subr.mxu0 0.0
    %1084 = vmatpush1.msra.mxu0 0.0
    %1085 = vmatprep.subr.mxu0 0.0
    %1086 = vmatpush1.msra.mxu0 0.0
    %1087 = vmatprep.subr.mxu0 0.0
    %1088 = vmatpush1.msra.mxu0 0.0
    %1089 = vmatprep.subr.mxu0 0.0
    %1090 = vmatpush1.msra.mxu0 0.0
    %1091 = vmatprep.subr.mxu0 0.0
    %1092 = vmatpush1.msra.mxu0 0.0
    %1093 = vmatprep.subr.mxu0 0.0
    %1094 = vmatpush1.msra.mxu0 0.0
    %1095 = vmatprep.subr.mxu0 0.0
    %1096 = vmatpush1.msra.mxu0 0.0
    %1097 = vmatprep.subr.mxu0 0.0
    %1098 = vmatpush1.msra.mxu0 0.0
    %1099 = vmatprep.subr.mxu0 0.0
    %1100 = vmatpush1.msra.mxu0 0.0
    %1101 = vmatprep.subr.mxu0 0.0
    %1102 = vmatpush1.msra.mxu0 0.0
    %1103 = vmatprep.subr.mxu0 0.0
    %1104 = vmatpush1.msra.mxu0 0.0
    %1105 = vmatprep.subr.mxu0 0.0
    %1106 = vmatpush1.msra.mxu0 0.0
    %1107 = vmatprep.subr.mxu0 0.0
    %1108 = vmatpush1.msra.mxu0 0.0
    %1109 = vmatprep.subr.mxu0 0.0
    %1110 = vmatpush1.msra.mxu0 0.0
    %1111 = vmatprep.subr.mxu0 0.0
    %1112 = vmatpush1.msra.mxu0 0.0
    %1113 = vmatprep.subr.mxu0 0.0
    %1114 = vmatpush1.msra.mxu0 0.0
    %1115 = vmatprep.subr.mxu0 0.0
    %1116 = vmatpush1.msra.mxu0 0.0
    %1117 = vmatprep.subr.mxu0 0.0
    %1118 = vmatpush1.msra.mxu0 0.0
    %1119 = vmatprep.subr.mxu0 0.0
    %1120 = vmatpush1.msra.mxu0 0.0
    %1121 = vmatprep.subr.mxu0 0.0
    %1122 = vmatpush1.msra.mxu0 0.0
    %1123 = vmatprep.subr.mxu0 0.0
    %1124 = vmatpush1.msra.mxu0 0.0
    %1125 = vmatprep.subr.mxu0 0.0
    %1126 = vmatpush1.msra.mxu0 0.0
    %1127 = vmatprep.subr.mxu0 0.0
    %1128 = vmatpush1.msra.mxu0 0.0
    %1129 = vmatprep.subr.mxu0 0.0
    %1130 = vmatpush1.msra.mxu0 0.0
    %1131 = vmatprep.subr.mxu0 0.0
    %1132 = vmatpush1.msra.mxu0 0.0
    %1133 = vmatprep.subr.mxu0 0.0
    %1134 = vmatpush1.msra.mxu0 0.0
    %1135 = vmatprep.subr.mxu0 0.0
    %1136 = vmatpush1.msra.mxu0 0.0
    %1137 = vmatprep.subr.mxu0 0.0
    %1138 = vmatpush1.msra.mxu0 0.0
    %1139 = vmatprep.mubr.f32.mxu0 0.0
    %1140 = vmatmul.mubr.f32.gmra.mrb[0].mxu0 %v170
    %v1141 = vpop.f32.mrb[0].mxu0
    %v1142 = vadd.f32 0.0, %v1141
    %v1143 = vpop.f32.mrb[0].mxu0
    %1144 = vmatprep.mubr.f32.mxu0 0.0
    %1145 = vmatmul.mubr.f32.gmra.mrb[0].mxu0 %v173
    %v1146 = vpop.f32.mrb[0].mxu0
    %v1147 = vadd.f32 0.0, %v1146
    %v1148 = vpop.f32.mrb[0].mxu0
    %1149 = vdwg.mxu0
    %1150 = vmatprep.subr.mxu0 0.0
    %1151 = vmatpush1.msra.mxu0 %v1063
    %1152 = vmatprep.subr.mxu0 0.0
    %1153 = vmatpush1.msra.mxu0 %v1064
    %1154 = vmatprep.subr.mxu0 0.0
    %1155 = vmatpush1.msra.mxu0 %v1065
    %1156 = vmatprep.subr.mxu0 0.0
    %1157 = vmatpush1.msra.mxu0 %v1066
    %1158 = vmatprep.subr.mxu0 0.0
    %1159 = vmatpush1.msra.mxu0 0.0
    %1160 = vmatprep.subr.mxu0 0.0
    %1161 = vmatpush1.msra.mxu0 0.0
    %1162 = vmatprep.subr.mxu0 0.0
    %1163 = vmatpush1.msra.mxu0 0.0
    %1164 = vmatprep.subr.mxu0 0.0
    %1165 = vmatpush1.msra.mxu0 0.0
    %1166 = vmatprep.subr.mxu0 0.0
    %1167 = vmatpush1.msra.mxu0 0.0
    %1168 = vmatprep.subr.mxu0 0.0
    %1169 = vmatpush1.msra.mxu0 0.0
    %1170 = vmatprep.subr.mxu0 0.0
    %1171 = vmatpush1.msra.mxu0 0.0
    %1172 = vmatprep.subr.mxu0 0.0
    %1173 = vmatpush1.msra.mxu0 0.0
    %1174 = vmatprep.subr.mxu0 0.0
    %1175 = vmatpush1.msra.mxu0 0.0
    %1176 = vmatprep.subr.mxu0 0.0
    %1177 = vmatpush1.msra.mxu0 0.0
    %1178 = vmatprep.subr.mxu0 0.0
    %1179 = vmatpush1.msra.mxu0 0.0
    %1180 = vmatprep.subr.mxu0 0.0
    %1181 = vmatpush1.msra.mxu0 0.0
    %1182 = vmatprep.subr.mxu0 0.0
    %1183 = vmatpush1.msra.mxu0 0.0
    %1184 = vmatprep.subr.mxu0 0.0
    %1185 = vmatpush1.msra.mxu0 0.0
    %1186 = vmatprep.subr.mxu0 0.0
    %1187 = vmatpush1.msra.mxu0 0.0
    %1188 = vmatprep.subr.mxu0 0.0
    %1189 = vmatpush1.msra.mxu0 0.0
    %1190 = vmatprep.subr.mxu0 0.0
    %1191 = vmatpush1.msra.mxu0 0.0
    %1192 = vmatprep.subr.mxu0 0.0
    %1193 = vmatpush1.msra.mxu0 0.0
    %1194 = vmatprep.subr.mxu0 0.0
    %1195 = vmatpush1.msra.mxu0 0.0
    %1196 = vmatprep.subr.mxu0 0.0
    %1197 = vmatpush1.msra.mxu0 0.0
    %1198 = vmatprep.subr.mxu0 0.0
    %1199 = vmatpush1.msra.mxu0 0.0
    %1200 = vmatprep.subr.mxu0 0.0
    %1201 = vmatpush1.msra.mxu0 0.0
    %1202 = vmatprep.subr.mxu0 0.0
    %1203 = vmatpush1.msra.mxu0 0.0
    %1204 = vmatprep.subr.mxu0 0.0
    %1205 = vmatpush1.msra.mxu0 0.0
    %1206 = vmatprep.subr.mxu0 0.0
    %1207 = vmatpush1.msra.mxu0 0.0
    %1208 = vmatprep.subr.mxu0 0.0
    %1209 = vmatpush1.msra.mxu0 0.0
    %1210 = vmatprep.subr.mxu0 0.0
    %1211 = vmatpush1.msra.mxu0 0.0
    %1212 = vmatprep.subr.mxu0 0.0
    %1213 = vmatpush1.msra.mxu0 0.0
    %1214 = vmatprep.mubr.f32.mxu0 0.0
    %1215 = vmatmul.mubr.f32.gmra.mrb[0].mxu0 %v170
    %v1216 = vpop.f32.mrb[0].mxu0
    %v1217 = vadd.f32 0.0, %v1216
    %v1218 = vpop.f32.mrb[0].mxu0
    %1219 = vmatprep.mubr.f32.mxu0 0.0
    %1220 = vmatmul.mubr.f32.gmra.mrb[0].mxu0 %v173
    %v1221 = vpop.f32.mrb[0].mxu0
    %v1222 = vadd.f32 0.0, %v1221
    %v1223 = vpop.f32.mrb[0].mxu0
    %1224 = vdwg.mxu0
    %1225 = vmatprep.subr.mxu0 0.0
    %1226 = vmatpush1.msra.mxu0 %v1067
    %1227 = vmatprep.subr.mxu0 0.0
    %1228 = vmatpush1.msra.mxu0 %v1068
    %1229 = vmatprep.subr.mxu0 0.0
    %1230 = vmatpush1.msra.mxu0 %v1069
    %1231 = vmatprep.subr.mxu0 0.0
    %1232 = vmatpush1.msra.mxu0 %v1070
    %1233 = vmatprep.subr.mxu0 0.0
    %1234 = vmatpush1.msra.mxu0 0.0
    %1235 = vmatprep.subr.mxu0 0.0
    %1236 = vmatpush1.msra.mxu0 0.0
    %1237 = vmatprep.subr.mxu0 0.0
    %1238 = vmatpush1.msra.mxu0 0.0
    %1239 = vmatprep.subr.mxu0 0.0
    %1240 = vmatpush1.msra.mxu0 0.0
    %1241 = vmatprep.subr.mxu0 0.0
    %1242 = vmatpush1.msra.mxu0 0.0
    %1243 = vmatprep.subr.mxu0 0.0
    %1244 = vmatpush1.msra.mxu0 0.0
    %1245 = vmatprep.subr.mxu0 0.0
    %1246 = vmatpush1.msra.mxu0 0.0
    %1247 = vmatprep.subr.mxu0 0.0
    %1248 = vmatpush1.msra.mxu0 0.0
    %1249 = vmatprep.subr.mxu0 0.0
    %1250 = vmatpush1.msra.mxu0 0.0
    %1251 = vmatprep.subr.mxu0 0.0
    %1252 = vmatpush1.msra.mxu0 0.0
    %1253 = vmatprep.subr.mxu0 0.0
    %1254 = vmatpush1.msra.mxu0 0.0
    %1255 = vmatprep.subr.mxu0 0.0
    %1256 = vmatpush1.msra.mxu0 0.0
    %1257 = vmatprep.subr.mxu0 0.0
    %1258 = vmatpush1.msra.mxu0 0.0
    %1259 = vmatprep.subr.mxu0 0.0
    %1260 = vmatpush1.msra.mxu0 0.0
    %1261 = vmatprep.subr.mxu0 0.0
    %1262 = vmatpush1.msra.mxu0 0.0
    %1263 = vmatprep.subr.mxu0 0.0
    %1264 = vmatpush1.msra.mxu0 0.0
    %1265 = vmatprep.subr.mxu0 0.0
    %1266 = vmatpush1.msra.mxu0 0.0
    %1267 = vmatprep.subr.mxu0 0.0
    %1268 = vmatpush1.msra.mxu0 0.0
    %1269 = vmatprep.subr.mxu0 0.0
    %1270 = vmatpush1.msra.mxu0 0.0
    %1271 = vmatprep.subr.mxu0 0.0
    %1272 = vmatpush1.msra.mxu0 0.0
    %1273 = vmatprep.subr.mxu0 0.0
    %1274 = vmatpush1.msra.mxu0 0.0
    %1275 = vmatprep.subr.mxu0 0.0
    %1276 = vmatpush1.msra.mxu0 0.0
    %1277 = vmatprep.subr.mxu0 0.0
    %1278 = vmatpush1.msra.mxu0 0.0
    %1279 = vmatprep.subr.mxu0 0.0
    %1280 = vmatpush1.msra.mxu0 0.0
    %1281 = vmatprep.subr.mxu0 0.0
    %1282 = vmatpush1.msra.mxu0 0.0
    %1283 = vmatprep.subr.mxu0 0.0
    %1284 = vmatpush1.msra.mxu0 0.0
    %1285 = vmatprep.subr.mxu0 0.0
    %1286 = vmatpush1.msra.mxu0 0.0
    %1287 = vmatprep.subr.mxu0 0.0
    %1288 = vmatpush1.msra.mxu0 0.0
    %1289 = vmatprep.mubr.f32.mxu0 0.0
    %1290 = vmatmul.mubr.f32.gmra.mrb[0].mxu0 %v170
    %v1291 = vpop.f32.mrb[0].mxu0
    %v1292 = vadd.f32 0.0, %v1291
    %v1293 = vpop.f32.mrb[0].mxu0
    %1294 = vmatprep.mubr.f32.mxu0 0.0
    %1295 = vmatmul.mubr.f32.gmra.mrb[0].mxu0 %v173
    %v1296 = vpop.f32.mrb[0].mxu0
    %v1297 = vadd.f32 0.0, %v1296
    %v1298 = vpop.f32.mrb[0].mxu0
    %1299 = vdwg.mxu0
    %1300 = vmatprep.subr.mxu0 0.0
    %1301 = vmatpush1.msra.mxu0 %v1071
    %1302 = vmatprep.subr.mxu0 0.0
    %1303 = vmatpush1.msra.mxu0 %v1072
    %1304 = vmatprep.subr.mxu0 0.0
    %1305 = vmatpush1.msra.mxu0 %v1073
    %1306 = vmatprep.subr.mxu0 0.0
    %1307 = vmatpush1.msra.mxu0 %v1074
    %1308 = vmatprep.subr.mxu0 0.0
    %1309 = vmatpush1.msra.mxu0 0.0
    %1310 = vmatprep.subr.mxu0 0.0
    %1311 = vmatpush1.msra.mxu0 0.0
    %1312 = vmatprep.subr.mxu0 0.0
    %1313 = vmatpush1.msra.mxu0 0.0
    %1314 = vmatprep.subr.mxu0 0.0
    %1315 = vmatpush1.msra.mxu0 0.0
    %1316 = vmatprep.subr.mxu0 0.0
    %1317 = vmatpush1.msra.mxu0 0.0
    %1318 = vmatprep.subr.mxu0 0.0
    %1319 = vmatpush1.msra.mxu0 0.0
    %1320 = vmatprep.subr.mxu0 0.0
    %1321 = vmatpush1.msra.mxu0 0.0
    %1322 = vmatprep.subr.mxu0 0.0
    %1323 = vmatpush1.msra.mxu0 0.0
    %1324 = vmatprep.subr.mxu0 0.0
    %1325 = vmatpush1.msra.mxu0 0.0
    %1326 = vmatprep.subr.mxu0 0.0
    %1327 = vmatpush1.msra.mxu0 0.0
    %1328 = vmatprep.subr.mxu0 0.0
    %1329 = vmatpush1.msra.mxu0 0.0
    %1330 = vmatprep.subr.mxu0 0.0
    %1331 = vmatpush1.msra.mxu0 0.0
    %1332 = vmatprep.subr.mxu0 0.0
    %1333 = vmatpush1.msra.mxu0 0.0
    %1334 = vmatprep.subr.mxu0 0.0
    %1335 = vmatpush1.msra.mxu0 0.0
    %1336 = vmatprep.subr.mxu0 0.0
    %1337 = vmatpush1.msra.mxu0 0.0
    %1338 = vmatprep.subr.mxu0 0.0
    %1339 = vmatpush1.msra.mxu0 0.0
    %1340 = vmatprep.subr.mxu0 0.0
    %1341 = vmatpush1.msra.mxu0 0.0
    %1342 = vmatprep.subr.mxu0 0.0
    %1343 = vmatpush1.msra.mxu0 0.0
    %1344 = vmatprep.subr.mxu0 0.0
    %1345 = vmatpush1.msra.mxu0 0.0
    %1346 = vmatprep.subr.mxu0 0.0
    %1347 = vmatpush1.msra.mxu0 0.0
    %1348 = vmatprep.subr.mxu0 0.0
    %1349 = vmatpush1.msra.mxu0 0.0
    %1350 = vmatprep.subr.mxu0 0.0
    %1351 = vmatpush1.msra.mxu0 0.0
    %1352 = vmatprep.subr.mxu0 0.0
    %1353 = vmatpush1.msra.mxu0 0.0
    %1354 = vmatprep.subr.mxu0 0.0
    %1355 = vmatpush1.msra.mxu0 0.0
    %1356 = vmatprep.subr.mxu0 0.0
    %1357 = vmatpush1.msra.mxu0 0.0
    %1358 = vmatprep.subr.mxu0 0.0
    %1359 = vmatpush1.msra.mxu0 0.0
    %1360 = vmatprep.subr.mxu0 0.0
    %1361 = vmatpush1.msra.mxu0 0.0
    %1362 = vmatprep.subr.mxu0 0.0
    %1363 = vmatpush1.msra.mxu0 0.0
    %1364 = vmatprep.mubr.f32.mxu0 0.0
    %1365 = vmatmul.mubr.f32.gmra.mrb[0].mxu0 %v170
    %v1366 = vpop.f32.mrb[0].mxu0
    %v1367 = vadd.f32 0.0, %v1366
    %v1368 = vpop.f32.mrb[0].mxu0
    %1369 = vmatprep.mubr.f32.mxu0 0.0
    %1370 = vmatmul.mubr.f32.gmra.mrb[0].mxu0 %v173
    %v1371 = vpop.f32.mrb[0].mxu0
    %v1372 = vadd.f32 0.0, %v1371
    %v1373 = vpop.f32.mrb[0].mxu0
    %1374 = vdwg.mxu0
    %v1375 = vld [vmem:[#allocation4] sm:$0xff]
    %v1376 = vld [vmem:[#allocation4 + $0x8] sm:$0xff]
    %v1377 = vld [vmem:[#allocation4 + $0x10] sm:$0xff]
    %v1378 = vld [vmem:[#allocation4 + $0x18] sm:$0xff]
    %v1379 = vld [vmem:[#allocation4 + $0x20] sm:$0xff]
    %v1380 = vld [vmem:[#allocation4 + $0x28] sm:$0xff]
    %v1381 = vld [vmem:[#allocation4 + $0x30] sm:$0xff]
    %v1382 = vld [vmem:[#allocation4 + $0x38] sm:$0xff]
    %1384 = vset.pattern.permute.xlu0 0
    %1385 = vperm.xlu0 %1384, %v923
    %v1386 = vpop.permute.xlu0 %1385
    %1389 = vset.pattern.permute.xlu0 0
    %1390 = vperm.xlu0 %1389, %v925
    %v1391 = vpop.permute.xlu0 %1390
    %1394 = vset.pattern.permute.xlu0 0
    %1395 = vperm.xlu0 %1394, %v927
    %v1396 = vpop.permute.xlu0 %1395
    %1399 = vset.pattern.permute.xlu0 0
    %1400 = vperm.xlu0 %1399, %v929
    %v1401 = vpop.permute.xlu0 %1400
    %1404 = vset.pattern.permute.xlu0 0
    %1405 = vperm.xlu0 %1404, %v931
    %v1406 = vpop.permute.xlu0 %1405
    %1409 = vset.pattern.permute.xlu0 0
    %1410 = vperm.xlu0 %1409, %v933
    %v1411 = vpop.permute.xlu0 %1410
    %1414 = vset.pattern.permute.xlu0 0
    %1415 = vperm.xlu0 %1414, %v935
    %v1416 = vpop.permute.xlu0 %1415
    %1419 = vset.pattern.permute.xlu0 0
    %1420 = vperm.xlu0 %1419, %v937
    %v1421 = vpop.permute.xlu0 %1420
    %v1423 = vmul.f32 %v1386, %v1375
    %v1424 = vmul.f32 %v1391, %v1376
    %v1425 = vmul.f32 %v1396, %v1377
    %v1426 = vmul.f32 %v1401, %v1378
    %v1427 = vmul.f32 %v1406, %v1379
    %v1428 = vmul.f32 %v1411, %v1380
    %v1429 = vmul.f32 %v1416, %v1381
    %v1430 = vmul.f32 %v1421, %v1382
    %v1432 = vsel %vm881, %v987, 0
    %v1435 = vsel %vm881, %v989, 0
    %1437 = vmatprep.subr.mxu0 0.0
    %1438 = vmatpush1.msra.mxu0 %v1142
    %1439 = vmatprep.subr.mxu0 0.0
    %1440 = vmatpush1.msra.mxu0 %v1147
    %1441 = vmatprep.subr.mxu0 0.0
    %1442 = vmatpush1.msra.mxu0 0.0
    %1443 = vmatprep.subr.mxu0 0.0
    %1444 = vmatpush1.msra.mxu0 0.0
    %1445 = vmatprep.subr.mxu0 0.0
    %1446 = vmatpush1.msra.mxu0 0.0
    %1447 = vmatprep.subr.mxu0 0.0
    %1448 = vmatpush1.msra.mxu0 0.0
    %1449 = vmatprep.subr.mxu0 0.0
    %1450 = vmatpush1.msra.mxu0 0.0
    %1451 = vmatprep.subr.mxu0 0.0
    %1452 = vmatpush1.msra.mxu0 0.0
    %1453 = vmatprep.subr.mxu0 0.0
    %1454 = vmatpush1.msra.mxu0 0.0
    %1455 = vmatprep.subr.mxu0 0.0
    %1456 = vmatpush1.msra.mxu0 0.0
    %1457 = vmatprep.subr.mxu0 0.0
    %1458 = vmatpush1.msra.mxu0 0.0
    %1459 = vmatprep.subr.mxu0 0.0
    %1460 = vmatpush1.msra.mxu0 0.0
    %1461 = vmatprep.subr.mxu0 0.0
    %1462 = vmatpush1.msra.mxu0 0.0
    %1463 = vmatprep.subr.mxu0 0.0
    %1464 = vmatpush1.msra.mxu0 0.0
    %1465 = vmatprep.subr.mxu0 0.0
    %1466 = vmatpush1.msra.mxu0 0.0
    %1467 = vmatprep.subr.mxu0 0.0
    %1468 = vmatpush1.msra.mxu0 0.0
    %1469 = vmatprep.subr.mxu0 0.0
    %1470 = vmatpush1.msra.mxu0 0.0
    %1471 = vmatprep.subr.mxu0 0.0
    %1472 = vmatpush1.msra.mxu0 0.0
    %1473 = vmatprep.subr.mxu0 0.0
    %1474 = vmatpush1.msra.mxu0 0.0
    %1475 = vmatprep.subr.mxu0 0.0
    %1476 = vmatpush1.msra.mxu0 0.0
    %1477 = vmatprep.subr.mxu0 0.0
    %1478 = vmatpush1.msra.mxu0 0.0
    %1479 = vmatprep.subr.mxu0 0.0
    %1480 = vmatpush1.msra.mxu0 0.0
    %1481 = vmatprep.subr.mxu0 0.0
    %1482 = vmatpush1.msra.mxu0 0.0
    %1483 = vmatprep.subr.mxu0 0.0
    %1484 = vmatpush1.msra.mxu0 0.0
    %1485 = vmatprep.subr.mxu0 0.0
    %1486 = vmatpush1.msra.mxu0 0.0
    %1487 = vmatprep.subr.mxu0 0.0
    %1488 = vmatpush1.msra.mxu0 0.0
    %1489 = vmatprep.subr.mxu0 0.0
    %1490 = vmatpush1.msra.mxu0 0.0
    %1491 = vmatprep.subr.mxu0 0.0
    %1492 = vmatpush1.msra.mxu0 0.0
    %1493 = vmatprep.subr.mxu0 0.0
    %1494 = vmatpush1.msra.mxu0 0.0
    %1495 = vmatprep.subr.mxu0 0.0
    %1496 = vmatpush1.msra.mxu0 0.0
    %1497 = vmatprep.subr.mxu0 0.0
    %1498 = vmatpush1.msra.mxu0 0.0
    %1499 = vmatprep.subr.mxu0 0.0
    %1500 = vmatpush1.msra.mxu0 0.0
    %1501 = vmatprep.mubr.f32.mxu0 0.0
    %1502 = vmatmul.mubr.f32.gmra.mrb[0].mxu0 %v1432
    %v1503 = vpop.f32.mrb[0].mxu0
    %v1504 = vadd.f32 0.0, %v1503
    %v1505 = vpop.f32.mrb[0].mxu0
    %1506 = vmatprep.mubr.f32.mxu0 0.0
    %1507 = vmatmul.mubr.f32.gmra.mrb[0].mxu0 %v1435
    %v1508 = vpop.f32.mrb[0].mxu0
    %v1509 = vadd.f32 0.0, %v1508
    %v1510 = vpop.f32.mrb[0].mxu0
    %1511 = vdwg.mxu0
    %v1513 = vsel %vm881, %v991, 0
    %v1516 = vsel %vm881, %v993, 0
    %1518 = vmatprep.subr.mxu0 0.0
    %1519 = vmatpush1.msra.mxu0 %v1217
    %1520 = vmatprep.subr.mxu0 0.0
    %1521 = vmatpush1.msra.mxu0 %v1222
    %1522 = vmatprep.subr.mxu0 0.0
    %1523 = vmatpush1.msra.mxu0 0.0
    %1524 = vmatprep.subr.mxu0 0.0
    %1525 = vmatpush1.msra.mxu0 0.0
    %1526 = vmatprep.subr.mxu0 0.0
    %1527 = vmatpush1.msra.mxu0 0.0
    %1528 = vmatprep.subr.mxu0 0.0
    %1529 = vmatpush1.msra.mxu0 0.0
    %1530 = vmatprep.subr.mxu0 0.0
    %1531 = vmatpush1.msra.mxu0 0.0
    %1532 = vmatprep.subr.mxu0 0.0
    %1533 = vmatpush1.msra.mxu0 0.0
    %1534 = vmatprep.subr.mxu0 0.0
    %1535 = vmatpush1.msra.mxu0 0.0
    %1536 = vmatprep.subr.mxu0 0.0
    %1537 = vmatpush1.msra.mxu0 0.0
    %1538 = vmatprep.subr.mxu0 0.0
    %1539 = vmatpush1.msra.mxu0 0.0
    %1540 = vmatprep.subr.mxu0 0.0
    %1541 = vmatpush1.msra.mxu0 0.0
    %1542 = vmatprep.subr.mxu0 0.0
    %1543 = vmatpush1.msra.mxu0 0.0
    %1544 = vmatprep.subr.mxu0 0.0
    %1545 = vmatpush1.msra.mxu0 0.0
    %1546 = vmatprep.subr.mxu0 0.0
    %1547 = vmatpush1.msra.mxu0 0.0
    %1548 = vmatprep.subr.mxu0 0.0
    %1549 = vmatpush1.msra.mxu0 0.0
    %1550 = vmatprep.subr.mxu0 0.0
    %1551 = vmatpush1.msra.mxu0 0.0
    %1552 = vmatprep.subr.mxu0 0.0
    %1553 = vmatpush1.msra.mxu0 0.0
    %1554 = vmatprep.subr.mxu0 0.0
    %1555 = vmatpush1.msra.mxu0 0.0
    %1556 = vmatprep.subr.mxu0 0.0
    %1557 = vmatpush1.msra.mxu0 0.0
    %1558 = vmatprep.subr.mxu0 0.0
    %1559 = vmatpush1.msra.mxu0 0.0
    %1560 = vmatprep.subr.mxu0 0.0
    %1561 = vmatpush1.msra.mxu0 0.0
    %1562 = vmatprep.subr.mxu0 0.0
    %1563 = vmatpush1.msra.mxu0 0.0
    %1564 = vmatprep.subr.mxu0 0.0
    %1565 = vmatpush1.msra.mxu0 0.0
    %1566 = vmatprep.subr.mxu0 0.0
    %1567 = vmatpush1.msra.mxu0 0.0
    %1568 = vmatprep.subr.mxu0 0.0
    %1569 = vmatpush1.msra.mxu0 0.0
    %1570 = vmatprep.subr.mxu0 0.0
    %1571 = vmatpush1.msra.mxu0 0.0
    %1572 = vmatprep.subr.mxu0 0.0
    %1573 = vmatpush1.msra.mxu0 0.0
    %1574 = vmatprep.subr.mxu0 0.0
    %1575 = vmatpush1.msra.mxu0 0.0
    %1576 = vmatprep.subr.mxu0 0.0
    %1577 = vmatpush1.msra.mxu0 0.0
    %1578 = vmatprep.subr.mxu0 0.0
    %1579 = vmatpush1.msra.mxu0 0.0
    %1580 = vmatprep.subr.mxu0 0.0
    %1581 = vmatpush1.msra.mxu0 0.0
    %1582 = vmatprep.mubr.f32.mxu0 0.0
    %1583 = vmatmul.mubr.f32.gmra.mrb[0].mxu0 %v1513
    %v1584 = vpop.f32.mrb[0].mxu0
    %v1585 = vadd.f32 0.0, %v1584
    %v1586 = vpop.f32.mrb[0].mxu0
    %1587 = vmatprep.mubr.f32.mxu0 0.0
    %1588 = vmatmul.mubr.f32.gmra.mrb[0].mxu0 %v1516
    %v1589 = vpop.f32.mrb[0].mxu0
    %v1590 = vadd.f32 0.0, %v1589
    %v1591 = vpop.f32.mrb[0].mxu0
    %1592 = vdwg.mxu0
    %v1594 = vsel %vm881, %v995, 0
    %v1597 = vsel %vm881, %v997, 0
    %1599 = vmatprep.subr.mxu0 0.0
    %1600 = vmatpush1.msra.mxu0 %v1292
    %1601 = vmatprep.subr.mxu0 0.0
    %1602 = vmatpush1.msra.mxu0 %v1297
    %1603 = vmatprep.subr.mxu0 0.0
    %1604 = vmatpush1.msra.mxu0 0.0
    %1605 = vmatprep.subr.mxu0 0.0
    %1606 = vmatpush1.msra.mxu0 0.0
    %1607 = vmatprep.subr.mxu0 0.0
    %1608 = vmatpush1.msra.mxu0 0.0
    %1609 = vmatprep.subr.mxu0 0.0
    %1610 = vmatpush1.msra.mxu0 0.0
    %1611 = vmatprep.subr.mxu0 0.0
    %1612 = vmatpush1.msra.mxu0 0.0
    %1613 = vmatprep.subr.mxu0 0.0
    %1614 = vmatpush1.msra.mxu0 0.0
    %1615 = vmatprep.subr.mxu0 0.0
    %1616 = vmatpush1.msra.mxu0 0.0
    %1617 = vmatprep.subr.mxu0 0.0
    %1618 = vmatpush1.msra.mxu0 0.0
    %1619 = vmatprep.subr.mxu0 0.0
    %1620 = vmatpush1.msra.mxu0 0.0
    %1621 = vmatprep.subr.mxu0 0.0
    %1622 = vmatpush1.msra.mxu0 0.0
    %1623 = vmatprep.subr.mxu0 0.0
    %1624 = vmatpush1.msra.mxu0 0.0
    %1625 = vmatprep.subr.mxu0 0.0
    %1626 = vmatpush1.msra.mxu0 0.0
    %1627 = vmatprep.subr.mxu0 0.0
    %1628 = vmatpush1.msra.mxu0 0.0
    %1629 = vmatprep.subr.mxu0 0.0
    %1630 = vmatpush1.msra.mxu0 0.0
    %1631 = vmatprep.subr.mxu0 0.0
    %1632 = vmatpush1.msra.mxu0 0.0
    %1633 = vmatprep.subr.mxu0 0.0
    %1634 = vmatpush1.msra.mxu0 0.0
    %1635 = vmatprep.subr.mxu0 0.0
    %1636 = vmatpush1.msra.mxu0 0.0
    %1637 = vmatprep.subr.mxu0 0.0
    %1638 = vmatpush1.msra.mxu0 0.0
    %1639 = vmatprep.subr.mxu0 0.0
    %1640 = vmatpush1.msra.mxu0 0.0
    %1641 = vmatprep.subr.mxu0 0.0
    %1642 = vmatpush1.msra.mxu0 0.0
    %1643 = vmatprep.subr.mxu0 0.0
    %1644 = vmatpush1.msra.mxu0 0.0
    %1645 = vmatprep.subr.mxu0 0.0
    %1646 = vmatpush1.msra.mxu0 0.0
    %1647 = vmatprep.subr.mxu0 0.0
    %1648 = vmatpush1.msra.mxu0 0.0
    %1649 = vmatprep.subr.mxu0 0.0
    %1650 = vmatpush1.msra.mxu0 0.0
    %1651 = vmatprep.subr.mxu0 0.0
    %1652 = vmatpush1.msra.mxu0 0.0
    %1653 = vmatprep.subr.mxu0 0.0
    %1654 = vmatpush1.msra.mxu0 0.0
    %1655 = vmatprep.subr.mxu0 0.0
    %1656 = vmatpush1.msra.mxu0 0.0
    %1657 = vmatprep.subr.mxu0 0.0
    %1658 = vmatpush1.msra.mxu0 0.0
    %1659 = vmatprep.subr.mxu0 0.0
    %1660 = vmatpush1.msra.mxu0 0.0
    %1661 = vmatprep.subr.mxu0 0.0
    %1662 = vmatpush1.msra.mxu0 0.0
    %1663 = vmatprep.mubr.f32.mxu0 0.0
    %1664 = vmatmul.mubr.f32.gmra.mrb[0].mxu0 %v1594
    %v1665 = vpop.f32.mrb[0].mxu0
    %v1666 = vadd.f32 0.0, %v1665
    %v1667 = vpop.f32.mrb[0].mxu0
    %1668 = vmatprep.mubr.f32.mxu0 0.0
    %1669 = vmatmul.mubr.f32.gmra.mrb[0].mxu0 %v1597
    %v1670 = vpop.f32.mrb[0].mxu0
    %v1671 = vadd.f32 0.0, %v1670
    %v1672 = vpop.f32.mrb[0].mxu0
    %1673 = vdwg.mxu0
    %v1675 = vsel %vm881, %v999, 0
    %v1678 = vsel %vm881, %v1001, 0
    %1680 = vmatprep.subr.mxu0 0.0
    %1681 = vmatpush1.msra.mxu0 %v1367
    %1682 = vmatprep.subr.mxu0 0.0
    %1683 = vmatpush1.msra.mxu0 %v1372
    %1684 = vmatprep.subr.mxu0 0.0
    %1685 = vmatpush1.msra.mxu0 0.0
    %1686 = vmatprep.subr.mxu0 0.0
    %1687 = vmatpush1.msra.mxu0 0.0
    %1688 = vmatprep.subr.mxu0 0.0
    %1689 = vmatpush1.msra.mxu0 0.0
    %1690 = vmatprep.subr.mxu0 0.0
    %1691 = vmatpush1.msra.mxu0 0.0
    %1692 = vmatprep.subr.mxu0 0.0
    %1693 = vmatpush1.msra.mxu0 0.0
    %1694 = vmatprep.subr.mxu0 0.0
    %1695 = vmatpush1.msra.mxu0 0.0
    %1696 = vmatprep.subr.mxu0 0.0
    %1697 = vmatpush1.msra.mxu0 0.0
    %1698 = vmatprep.subr.mxu0 0.0
    %1699 = vmatpush1.msra.mxu0 0.0
    %1700 = vmatprep.subr.mxu0 0.0
    %1701 = vmatpush1.msra.mxu0 0.0
    %1702 = vmatprep.subr.mxu0 0.0
    %1703 = vmatpush1.msra.mxu0 0.0
    %1704 = vmatprep.subr.mxu0 0.0
    %1705 = vmatpush1.msra.mxu0 0.0
    %1706 = vmatprep.subr.mxu0 0.0
    %1707 = vmatpush1.msra.mxu0 0.0
    %1708 = vmatprep.subr.mxu0 0.0
    %1709 = vmatpush1.msra.mxu0 0.0
    %1710 = vmatprep.subr.mxu0 0.0
    %1711 = vmatpush1.msra.mxu0 0.0
    %1712 = vmatprep.subr.mxu0 0.0
    %1713 = vmatpush1.msra.mxu0 0.0
    %1714 = vmatprep.subr.mxu0 0.0
    %1715 = vmatpush1.msra.mxu0 0.0
    %1716 = vmatprep.subr.mxu0 0.0
    %1717 = vmatpush1.msra.mxu0 0.0
    %1718 = vmatprep.subr.mxu0 0.0
    %1719 = vmatpush1.msra.mxu0 0.0
    %1720 = vmatprep.subr.mxu0 0.0
    %1721 = vmatpush1.msra.mxu0 0.0
    %1722 = vmatprep.subr.mxu0 0.0
    %1723 = vmatpush1.msra.mxu0 0.0
    %1724 = vmatprep.subr.mxu0 0.0
    %1725 = vmatpush1.msra.mxu0 0.0
    %1726 = vmatprep.subr.mxu0 0.0
    %1727 = vmatpush1.msra.mxu0 0.0
    %1728 = vmatprep.subr.mxu0 0.0
    %1729 = vmatpush1.msra.mxu0 0.0
    %1730 = vmatprep.subr.mxu0 0.0
    %1731 = vmatpush1.msra.mxu0 0.0
    %1732 = vmatprep.subr.mxu0 0.0
    %1733 = vmatpush1.msra.mxu0 0.0
    %1734 = vmatprep.subr.mxu0 0.0
    %1735 = vmatpush1.msra.mxu0 0.0
    %1736 = vmatprep.subr.mxu0 0.0
    %1737 = vmatpush1.msra.mxu0 0.0
    %1738 = vmatprep.subr.mxu0 0.0
    %1739 = vmatpush1.msra.mxu0 0.0
    %1740 = vmatprep.subr.mxu0 0.0
    %1741 = vmatpush1.msra.mxu0 0.0
    %1742 = vmatprep.subr.mxu0 0.0
    %1743 = vmatpush1.msra.mxu0 0.0
    %1744 = vmatprep.mubr.f32.mxu0 0.0
    %1745 = vmatmul.mubr.f32.gmra.mrb[0].mxu0 %v1675
    %v1746 = vpop.f32.mrb[0].mxu0
    %v1747 = vadd.f32 0.0, %v1746
    %v1748 = vpop.f32.mrb[0].mxu0
    %1749 = vmatprep.mubr.f32.mxu0 0.0
    %1750 = vmatmul.mubr.f32.gmra.mrb[0].mxu0 %v1678
    %v1751 = vpop.f32.mrb[0].mxu0
    %v1752 = vadd.f32 0.0, %v1751
    %v1753 = vpop.f32.mrb[0].mxu0
    %1754 = vdwg.mxu0
    %v1755 = vadd.f32 %v1423, %v1504
    %v1756 = vadd.f32 %v1424, %v1509
    %v1757 = vadd.f32 %v1425, %v1585
    %v1758 = vadd.f32 %v1426, %v1590
    %v1759 = vadd.f32 %v1427, %v1666
    %v1760 = vadd.f32 %v1428, %v1671
    %v1761 = vadd.f32 %v1429, %v1747
    %v1762 = vadd.f32 %v1430, %v1752
    %1763 = vst.msk [vmem:[#allocation4] sm:$0xff] %vm156, %v1755
    %1764 = vst.msk [vmem:[#allocation4 + $0x8] sm:$0xff] %vm156, %v1756
    %1765 = vst.msk [vmem:[#allocation4 + $0x10] sm:$0xff] %vm156, %v1757
    %1766 = vst.msk [vmem:[#allocation4 + $0x18] sm:$0xff] %vm156, %v1758
    %1767 = vst.msk [vmem:[#allocation4 + $0x20] sm:$0xff] %vm156, %v1759
    %1768 = vst.msk [vmem:[#allocation4 + $0x28] sm:$0xff] %vm156, %v1760
    %1769 = vst.msk [vmem:[#allocation4 + $0x30] sm:$0xff] %vm156, %v1761
    %1770 = vst.msk [vmem:[#allocation4 + $0x38] sm:$0xff] %vm156, %v1762
    %1771 = vst.msk [vmem:[#allocation2] sm:$0xff] %vm1050, %v906
    %1772 = vst.msk [vmem:[#allocation2 + $0x8] sm:$0xff] %vm1050, %v907
    %1773 = vst.msk [vmem:[#allocation2 + $0x10] sm:$0xff] %vm1050, %v908
    %1774 = vst.msk [vmem:[#allocation2 + $0x18] sm:$0xff] %vm1050, %v909
    %1775 = vst.msk [vmem:[#allocation2 + $0x20] sm:$0xff] %vm1050, %v910
    %1776 = vst.msk [vmem:[#allocation2 + $0x28] sm:$0xff] %vm1050, %v911
    %1777 = vst.msk [vmem:[#allocation2 + $0x30] sm:$0xff] %vm1050, %v912
    %1778 = vst.msk [vmem:[#allocation2 + $0x38] sm:$0xff] %vm1050, %v913
    // Predicated region
    $region54: #{tpu_custom_call.1} parent=1 // pred_check
      %p1779 = pneg %p106
    $region55: #{tpu_custom_call.1} parent=1 // pred_check_branch
      %1781 = sbr.rel (%p1779) target = $region57
    $region56: #{tpu_custom_call.1} parent=1 // pred_region
      %v1782 = vld [vmem:[#allocation3] sm:$0xff]
      %v1783 = vld [vmem:[#allocation3 + $0x8] sm:$0xff]
      %v1784 = vld [vmem:[#allocation3 + $0x10] sm:$0xff]
      %v1785 = vld [vmem:[#allocation3 + $0x18] sm:$0xff]
      %v1786 = vld [vmem:[#allocation3 + $0x20] sm:$0xff]
      %v1787 = vld [vmem:[#allocation3 + $0x28] sm:$0xff]
      %v1788 = vld [vmem:[#allocation3 + $0x30] sm:$0xff]
      %v1789 = vld [vmem:[#allocation3 + $0x38] sm:$0xff]
      %v1790 = vrcp.pop %v1782
      %v1791 = vrcp.pop %v1783
      %v1792 = vrcp.pop %v1784
      %v1793 = vrcp.pop %v1785
      %v1794 = vrcp.pop %v1786
      %v1795 = vrcp.pop %v1787
      %v1796 = vrcp.pop %v1788
      %v1797 = vrcp.pop %v1789
      %v1798 = vld [vmem:[#allocation2] sm:$0xff]
      %v1799 = vld [vmem:[#allocation2 + $0x8] sm:$0xff]
      %v1800 = vld [vmem:[#allocation2 + $0x10] sm:$0xff]
      %v1801 = vld [vmem:[#allocation2 + $0x18] sm:$0xff]
      %v1802 = vld [vmem:[#allocation2 + $0x20] sm:$0xff]
      %v1803 = vld [vmem:[#allocation2 + $0x28] sm:$0xff]
      %v1804 = vld [vmem:[#allocation2 + $0x30] sm:$0xff]
      %v1805 = vld [vmem:[#allocation2 + $0x38] sm:$0xff]
      %vm1806 = vcmp.gt.f32.partialorder %v1798, -1e+29
      %vm1807 = vcmp.gt.f32.partialorder %v1799, -1e+29
      %vm1808 = vcmp.gt.f32.partialorder %v1800, -1e+29
      %vm1809 = vcmp.gt.f32.partialorder %v1801, -1e+29
      %vm1810 = vcmp.gt.f32.partialorder %v1802, -1e+29
      %vm1811 = vcmp.gt.f32.partialorder %v1803, -1e+29
      %vm1812 = vcmp.gt.f32.partialorder %v1804, -1e+29
      %vm1813 = vcmp.gt.f32.partialorder %v1805, -1e+29
      %v1814 = vld [vmem:[#allocation4] sm:$0xff]
      %v1815 = vld [vmem:[#allocation4 + $0x8] sm:$0xff]
      %v1816 = vld [vmem:[#allocation4 + $0x10] sm:$0xff]
      %v1817 = vld [vmem:[#allocation4 + $0x18] sm:$0xff]
      %v1818 = vld [vmem:[#allocation4 + $0x20] sm:$0xff]
      %v1819 = vld [vmem:[#allocation4 + $0x28] sm:$0xff]
      %v1820 = vld [vmem:[#allocation4 + $0x30] sm:$0xff]
      %v1821 = vld [vmem:[#allocation4 + $0x38] sm:$0xff]
      %1823 = vset.pattern.permute.xlu0 0
      %1824 = vperm.xlu0 %1823, %v1790
      %v1825 = vpop.permute.xlu0 %1824
      %1828 = vset.pattern.permute.xlu0 0
      %1829 = vperm.xlu0 %1828, %v1791
      %v1830 = vpop.permute.xlu0 %1829
      %1833 = vset.pattern.permute.xlu0 0
      %1834 = vperm.xlu0 %1833, %v1792
      %v1835 = vpop.permute.xlu0 %1834
      %1838 = vset.pattern.permute.xlu0 0
      %1839 = vperm.xlu0 %1838, %v1793
      %v1840 = vpop.permute.xlu0 %1839
      %1843 = vset.pattern.permute.xlu0 0
      %1844 = vperm.xlu0 %1843, %v1794
      %v1845 = vpop.permute.xlu0 %1844
      %1848 = vset.pattern.permute.xlu0 0
      %1849 = vperm.xlu0 %1848, %v1795
      %v1850 = vpop.permute.xlu0 %1849
      %1853 = vset.pattern.permute.xlu0 0
      %1854 = vperm.xlu0 %1853, %v1796
      %v1855 = vpop.permute.xlu0 %1854
      %1858 = vset.pattern.permute.xlu0 0
      %1859 = vperm.xlu0 %1858, %v1797
      %v1860 = vpop.permute.xlu0 %1859
      %v1862 = vmul.f32 %v1814, %v1825
      %v1863 = vmul.f32 %v1815, %v1830
      %v1864 = vmul.f32 %v1816, %v1835
      %v1865 = vmul.f32 %v1817, %v1840
      %v1866 = vmul.f32 %v1818, %v1845
      %v1867 = vmul.f32 %v1819, %v1850
      %v1868 = vmul.f32 %v1820, %v1855
      %v1869 = vmul.f32 %v1821, %v1860
      %v1870 = vsel %vm1806, 1, 0
      %v1871 = vsel %vm1807, 1, 0
      %v1872 = vsel %vm1808, 1, 0
      %v1873 = vsel %vm1809, 1, 0
      %v1874 = vsel %vm1810, 1, 0
      %v1875 = vsel %vm1811, 1, 0
      %v1876 = vsel %vm1812, 1, 0
      %v1877 = vsel %vm1813, 1, 0
      %1878 = vset.pattern.permute.xlu0 0
      %1879 = vperm.xlu0 %1878, %v1870
      %v1880 = vpop.permute.xlu0 %1879
      %1881 = vset.pattern.permute.xlu0 0
      %1882 = vperm.xlu0 %1881, %v1871
      %v1883 = vpop.permute.xlu0 %1882
      %1884 = vset.pattern.permute.xlu0 0
      %1885 = vperm.xlu0 %1884, %v1872
      %v1886 = vpop.permute.xlu0 %1885
      %1887 = vset.pattern.permute.xlu0 0
      %1888 = vperm.xlu0 %1887, %v1873
      %v1889 = vpop.permute.xlu0 %1888
      %1890 = vset.pattern.permute.xlu0 0
      %1891 = vperm.xlu0 %1890, %v1874
      %v1892 = vpop.permute.xlu0 %1891
      %1893 = vset.pattern.permute.xlu0 0
      %1894 = vperm.xlu0 %1893, %v1875
      %v1895 = vpop.permute.xlu0 %1894
      %1896 = vset.pattern.permute.xlu0 0
      %1897 = vperm.xlu0 %1896, %v1876
      %v1898 = vpop.permute.xlu0 %1897
      %1899 = vset.pattern.permute.xlu0 0
      %1900 = vperm.xlu0 %1899, %v1877
      %v1901 = vpop.permute.xlu0 %1900
      %vm1902 = vcmp.eq.s32.totalorder %v1880, 1
      %vm1903 = vcmp.eq.s32.totalorder %v1883, 1
      %vm1904 = vcmp.eq.s32.totalorder %v1886, 1
      %vm1905 = vcmp.eq.s32.totalorder %v1889, 1
      %vm1906 = vcmp.eq.s32.totalorder %v1892, 1
      %vm1907 = vcmp.eq.s32.totalorder %v1895, 1
      %vm1908 = vcmp.eq.s32.totalorder %v1898, 1
      %vm1909 = vcmp.eq.s32.totalorder %v1901, 1
      %v1910 = vsel %vm1902, %v1862, 0.0
      %v1911 = vsel %vm1903, %v1863, 0.0
      %v1912 = vsel %vm1904, %v1864, 0.0
      %v1913 = vsel %vm1905, %v1865, 0.0
      %v1914 = vsel %vm1906, %v1866, 0.0
      %v1915 = vsel %vm1907, %v1867, 0.0
      %v1916 = vsel %vm1908, %v1868, 0.0
      %v1917 = vsel %vm1909, %v1869, 0.0
      %v1918 = vsel %vm156, %v1910, 0.0
      %v1919 = vsel %vm156, %v1912, 0.0
      %v1920 = vadd.f32 %v1918, %v1919
      %v1921 = vsel %vm156, %v1914, 0.0
      %v1922 = vadd.f32 %v1920, %v1921
      %v1923 = vsel %vm156, %v1916, 0.0
      %v1924 = vadd.f32 %v1922, %v1923
      %v1925 = vsel %vm156, %v1911, 0.0
      %v1926 = vsel %vm156, %v1913, 0.0
      %v1927 = vadd.f32 %v1925, %v1926
      %v1928 = vsel %vm156, %v1915, 0.0
      %v1929 = vadd.f32 %v1927, %v1928
      %v1930 = vsel %vm156, %v1917, 0.0
      %v1931 = vadd.f32 %v1929, %v1930
      %v1932 = vld [vmem:[#allocation14] sm:$0xff]
      %v1933 = vld [vmem:[#allocation14 + $0x8] sm:$0xff]
      %v1934 = vld [vmem:[#allocation14 + $0x10] sm:$0xff]
      %v1935 = vld [vmem:[#allocation14 + $0x18] sm:$0xff]
      %1936 = vmatprep.subr.mxu0 0.0
      %1937 = vmatpush1.msra.mxu0 %v1932
      %1938 = vmatprep.subr.mxu0 0.0
      %1939 = vmatpush1.msra.mxu0 %v1933
      %1940 = vmatprep.subr.mxu0 0.0
      %1941 = vmatpush1.msra.mxu0 %v1934
      %1942 = vmatprep.subr.mxu0 0.0
      %1943 = vmatpush1.msra.mxu0 %v1935
      %1944 = vmatprep.subr.mxu0 0.0
      %1945 = vmatpush1.msra.mxu0 0.0
      %1946 = vmatprep.subr.mxu0 0.0
      %1947 = vmatpush1.msra.mxu0 0.0
      %1948 = vmatprep.subr.mxu0 0.0
      %1949 = vmatpush1.msra.mxu0 0.0
      %1950 = vmatprep.subr.mxu0 0.0
      %1951 = vmatpush1.msra.mxu0 0.0
      %1952 = vmatprep.subr.mxu0 0.0
      %1953 = vmatpush1.msra.mxu0 0.0
      %1954 = vmatprep.subr.mxu0 0.0
      %1955 = vmatpush1.msra.mxu0 0.0
      %1956 = vmatprep.subr.mxu0 0.0
      %1957 = vmatpush1.msra.mxu0 0.0
      %1958 = vmatprep.subr.mxu0 0.0
      %1959 = vmatpush1.msra.mxu0 0.0
      %1960 = vmatprep.subr.mxu0 0.0
      %1961 = vmatpush1.msra.mxu0 0.0
      %1962 = vmatprep.subr.mxu0 0.0
      %1963 = vmatpush1.msra.mxu0 0.0
      %1964 = vmatprep.subr.mxu0 0.0
      %1965 = vmatpush1.msra.mxu0 0.0
      %1966 = vmatprep.subr.mxu0 0.0
      %1967 = vmatpush1.msra.mxu0 0.0
      %1968 = vmatprep.subr.mxu0 0.0
      %1969 = vmatpush1.msra.mxu0 0.0
      %1970 = vmatprep.subr.mxu0 0.0
      %1971 = vmatpush1.msra.mxu0 0.0
      %1972 = vmatprep.subr.mxu0 0.0
      %1973 = vmatpush1.msra.mxu0 0.0
      %1974 = vmatprep.subr.mxu0 0.0
      %1975 = vmatpush1.msra.mxu0 0.0
      %1976 = vmatprep.subr.mxu0 0.0
      %1977 = vmatpush1.msra.mxu0 0.0
      %1978 = vmatprep.subr.mxu0 0.0
      %1979 = vmatpush1.msra.mxu0 0.0
      %1980 = vmatprep.subr.mxu0 0.0
      %1981 = vmatpush1.msra.mxu0 0.0
      %1982 = vmatprep.subr.mxu0 0.0
      %1983 = vmatpush1.msra.mxu0 0.0
      %1984 = vmatprep.subr.mxu0 0.0
      %1985 = vmatpush1.msra.mxu0 0.0
      %1986 = vmatprep.subr.mxu0 0.0
      %1987 = vmatpush1.msra.mxu0 0.0
      %1988 = vmatprep.subr.mxu0 0.0
      %1989 = vmatpush1.msra.mxu0 0.0
      %1990 = vmatprep.subr.mxu0 0.0
      %1991 = vmatpush1.msra.mxu0 0.0
      %1992 = vmatprep.subr.mxu0 0.0
      %1993 = vmatpush1.msra.mxu0 0.0
      %1994 = vmatprep.subr.mxu0 0.0
      %1995 = vmatpush1.msra.mxu0 0.0
      %1996 = vmatprep.subr.mxu0 0.0
      %1997 = vmatpush1.msra.mxu0 0.0
      %1998 = vmatprep.subr.mxu0 0.0
      %1999 = vmatpush1.msra.mxu0 0.0
      %2000 = vmatprep.mubr.f32.mxu0 0.0
      %2001 = vmatmul.mubr.f32.gmra.mrb[0].mxu0 %v568
      %v2002 = vpop.f32.mrb[0].mxu0
      %v2003 = vadd.f32 0.0, %v2002
      %v2004 = vpop.f32.mrb[0].mxu0
      %2005 = vmatprep.mubr.f32.mxu0 0.0
      %2006 = vmatmul.mubr.f32.gmra.mrb[0].mxu0 %v571
      %v2007 = vpop.f32.mrb[0].mxu0
      %v2008 = vadd.f32 0.0, %v2007
      %v2009 = vpop.f32.mrb[0].mxu0
      %2010 = vdwg.mxu0
      %v2011 = vmul.f32 %v2003, 0.1
      %v2012 = vmul.f32 %v2008, 0.1
      %v2013 = vmul.f32 %v1924, 0.9
      %v2014 = vmul.f32 %v1931, 0.9
      %v2015 = vadd.f32 %v2011, %v2013
      %v2016 = vadd.f32 %v2012, %v2014
      %v2017 = vmax.f32 %v2015, 0.0
      %v2018 = vmax.f32 %v2016, 0.0
      %v2019 = vadd.f32 %v136, %v2017
      %v2020 = vadd.f32 %v137, %v2018
      %2021 = vst.msk [vmem:[#allocation16] sm:$0xff] %vm156, %v2019
      %2022 = vst.msk [vmem:[#allocation16 + $0x8] sm:$0xff] %vm156, %v2020
    $region57: #{tpu_custom_call.1} parent=1 // pred_fallthru
      _
    // Predicated region
    $region58: #{tpu_custom_call.1} parent=1 // pred_check
      _
    $region59: #{tpu_custom_call.1} parent=1 // pred_check_branch
      %2024 = sbr.rel (0) target = $region61
    $region60: #{tpu_custom_call.1} parent=1 // pred_region
      %s2026 = ssub.s32 256, 256
      %2027 = vsyncadd [#allocation7], %s2026
      %s2028 = sshll.u32 [#allocation16], 4
      %s2029 = int_to_ptr.vmem [resolvable:$true] %s2028
      %2034 = dma.vmem_to_hbm [thread:$0]  %s2029, 256, %s6, [#allocation7], 128, 128, 8
    $region61: #{tpu_custom_call.1} parent=1 // pred_fallthru
      _
    // Predicated region
    $region62: #{tpu_custom_call.1} parent=1 // pred_check
      _
    $region63: #{tpu_custom_call.1} parent=1 // pred_check_branch
      %2036 = sbr.rel (0) target = $region65
    $region64: #{tpu_custom_call.1} parent=1 // pred_region
      %2037 = dma.done [#allocation7], 256
    $region65: #{tpu_custom_call.1} parent=1 // pred_fallthru
      _
    %2038 = vsyncpa [#allocation6], 1
    %2039 = vsyncpa [#allocation9], 1
    %2040 = vsyncpa [#allocation12], 1
    %2041 = vsyncpa [#allocation15], 1
    %2042 = vsyncpa [#allocation7], 1

</llo_original>
